<compile_context>
chip_gen: v6e
topology: v6e:2x2x1
jax: 0.10.0
libtpu: 0.0.40
codegen_flags: <defaults>
</compile_context>

<pallas_src>
import numpy as np
import jax
import jax.numpy as jnp
from jax.experimental import pallas as pl
from jax.experimental.pallas import tpu as pltpu


# ----------------------------------------------------------------------------
# Fused encoder kernel: one grid step = one image.
# Activation layout: 2-D (H, W*C), channels fastest along lanes.
# A 3x3 / stride-2 / padded conv is computed as
#     out = relu( bias_row + sum_ki (R_ki @ A) @ M_ki )
# where R_ki (Hout, Hin) selects input rows 2*ho+ki-pad (zero row when padded)
# and M_ki (Win*Cin, Wout*Cout) scatters the conv weights over the column grid.
# ----------------------------------------------------------------------------
def _encoder_kernel(x_ref,
                    r1_ref, m1_ref, bb1_ref,
                    r2_ref, m2_ref, bb2_ref,
                    r3_ref, m3_ref, bb3_ref,
                    wl1_ref, bl1_ref, wl2_ref, bl2_ref,
                    o_ref):
    f32 = jnp.float32

    def conv3x3_s2(a, r, m, brow):
        # a: (Hin, Win*Cin), r: (3*Hout, Hin), m: (3*Win*Cin, Wout*Cout),
        # brow: (1, Wout*Cout)
        hout = r.shape[0] // 3
        wcin = m.shape[0] // 3
        b = jnp.dot(r, a, preferred_element_type=f32)           # (3*Hout, Win*Cin)
        acc = brow
        for k in range(3):
            acc = acc + jnp.dot(b[k * hout:(k + 1) * hout, :],
                                m[k * wcin:(k + 1) * wcin, :],
                                preferred_element_type=f32)
        return jnp.maximum(acc, 0.0)                             # (Hout, Wout*Cout)

    a0 = x_ref[...].reshape(x_ref.shape[1], x_ref.shape[2])      # (28, 28)
    h1 = conv3x3_s2(a0, r1_ref[...], m1_ref[...], bb1_ref[...])  # (14, 14*8)
    h2 = conv3x3_s2(h1, r2_ref[...], m2_ref[...], bb2_ref[...])  # (7, 7*16)
    h3 = conv3x3_s2(h2, r3_ref[...], m3_ref[...], bb3_ref[...])  # (3, 3*32)

    # Flatten + Linear(288,128): the PyTorch NCHW flatten permutation is folded
    # into wl1's rows on the host; the flatten itself is expressed as three
    # row-chunk matmuls, so no in-kernel reshape/transpose of h3 is needed.
    wl1 = wl1_ref[...]
    chunk = h3.shape[1]                                          # 96
    l1 = bl1_ref[...]
    for h in range(h3.shape[0]):
        l1 = l1 + jnp.dot(h3[h:h + 1, :], wl1[h * chunk:(h + 1) * chunk, :],
                          preferred_element_type=f32)
    l1 = jnp.maximum(l1, 0.0)                                    # (1, 128)

    out = jnp.dot(l1, wl2_ref[...], preferred_element_type=f32) + bl2_ref[...]
    o_ref[...] = out.reshape(1, 1, out.shape[1]).astype(o_ref.dtype)


# ----------------------------------------------------------------------------
# One-time parameter preprocessing (host side, hoisted out of the forward pass).
# ----------------------------------------------------------------------------
# TODO(synk): BatchNorm2d is implemented in eval mode (running statistics) and
# folded into conv2; PyTorch train-mode batch statistics are not reproduced.
def prepare_params(params, eps=1e-5):
    p = {k: np.asarray(v, np.float32) for k, v in params.items()}

    scale = p["bn_gamma"] / np.sqrt(p["bn_var"] + eps)
    shift = p["bn_beta"] - p["bn_mean"] * scale
    w2f = p["w2"] * scale[:, None, None, None]
    b2f = p["b2"] * scale + shift

    def make_R(hout, hin, pad):
        R = np.zeros((3 * hout, hin), np.float32)
        for ki in range(3):
            for ho in range(hout):
                h = 2 * ho + ki - pad
                if 0 <= h < hin:
                    R[ki * hout + ho, h] = 1.0
        return R

    def make_M(wout, win, cin, cout, pad, w_oihw):
        M = np.zeros((3 * win * cin, wout * cout), np.float32)
        for ki in range(3):
            for kj in range(3):
                wt = w_oihw[:, :, ki, kj].T                      # (cin, cout)
                for wo in range(wout):
                    wi = 2 * wo + kj - pad
                    if 0 <= wi < win:
                        r0 = ki * win * cin + wi * cin
                        M[r0:r0 + cin, wo * cout:(wo + 1) * cout] += wt
        return M

    def bias_row(b, wout):
        return np.tile(b, wout).reshape(1, -1)

    # wl1 rows are ordered c*9 + h*3 + w (PyTorch flatten of NCHW); the kernel's
    # conv3 activation rows are ordered (h, w*32 + c), so permute rows once.
    wl1p = p["wl1"].reshape(32, 3, 3, 128).transpose(1, 2, 0, 3).reshape(288, 128)

    host = {
        "r1": make_R(14, 28, 1), "m1": make_M(14, 28, 1, 8, 1, p["w1"]),
        "bb1": bias_row(p["b1"], 14),
        "r2": make_R(7, 14, 1), "m2": make_M(7, 14, 8, 16, 1, w2f),
        "bb2": bias_row(b2f, 7),
        "r3": make_R(3, 7, 0), "m3": make_M(3, 7, 16, 32, 0, p["w3"]),
        "bb3": bias_row(p["b3"], 3),
        "wl1": wl1p, "bl1": p["bl1"].reshape(1, -1),
        "wl2": p["wl2"], "bl2": p["bl2"].reshape(1, -1),
    }
    return {k: jnp.asarray(v, jnp.float32) for k, v in host.items()}


# ----------------------------------------------------------------------------
# Public forward: single fused pallas_call, batch on a "parallel" grid axis.
# ----------------------------------------------------------------------------
@jax.jit
def encoder_forward(prepped, x_nchw):
    N, _, H, W = x_nchw.shape
    D = prepped["wl2"].shape[1]
    x = x_nchw[:, 0, :, :].astype(jnp.float32)                   # (N, 28, 28)

    args = (x,
            prepped["r1"], prepped["m1"], prepped["bb1"],
            prepped["r2"], prepped["m2"], prepped["bb2"],
            prepped["r3"], prepped["m3"], prepped["bb3"],
            prepped["wl1"], prepped["bl1"], prepped["wl2"], prepped["bl2"])

    def full(a):  # full-array block, resident across all grid steps
        return pl.BlockSpec(a.shape, lambda n: (0,) * a.ndim)

    in_specs = [pl.BlockSpec((1, H, W), lambda n: (n, 0, 0))] + [full(a) for a in args[1:]]

    per_img_flops = 2 * (42 * 28 * 28 + 3 * 14 * 28 * 112
                         + 21 * 14 * 112 + 3 * 7 * 112 * 112
                         + 9 * 7 * 112 + 3 * 3 * 112 * 96
                         + 3 * 96 * 128 + 128 * D)
    weight_elems = sum(int(np.prod(a.shape)) for a in args[1:])
    cost = pl.CostEstimate(flops=N * per_img_flops, transcendentals=0,
                           bytes_accessed=4 * (N * H * W + N * D + weight_elems))

    out = pl.pallas_call(
        _encoder_kernel,
        out_shape=jax.ShapeDtypeStruct((N, 1, D), jnp.float32),
        grid=(N,),
        in_specs=in_specs,
        out_specs=pl.BlockSpec((1, 1, D), lambda n: (n, 0, 0)),
        compiler_params=pltpu.CompilerParams(dimension_semantics=("parallel",)),
        cost_estimate=cost,
    )(*args)
    return out[:, 0, :]


# ----------------------------------------------------------------------------
# Deterministic parameter construction (shapes from Encoder.__init__).
# ----------------------------------------------------------------------------
def init_params(key, encoded_space_dim):
    ks = jax.random.split(key, 10)

    def w(k, shape, fan_in):
        return (jax.random.normal(k, shape, jnp.float32) / jnp.sqrt(fan_in)).astype(jnp.float32)

    return {
        "w1": w(ks[0], (8, 1, 3, 3), 1 * 9),
        "b1": 0.01 * jax.random.normal(ks[1], (8,), jnp.float32),
        "w2": w(ks[2], (16, 8, 3, 3), 8 * 9),
        "b2": 0.01 * jax.random.normal(ks[3], (16,), jnp.float32),
        "bn_gamma": jnp.ones((16,), jnp.float32),
        "bn_beta": jnp.zeros((16,), jnp.float32),
        "bn_mean": jnp.zeros((16,), jnp.float32),
        "bn_var": jnp.ones((16,), jnp.float32),
        "w3": w(ks[4], (32, 16, 3, 3), 16 * 9),
        "b3": 0.01 * jax.random.normal(ks[5], (32,), jnp.float32),
        "wl1": w(ks[6], (288, 128), 288),
        "bl1": 0.01 * jax.random.normal(ks[7], (128,), jnp.float32),
        "wl2": w(ks[8], (128, encoded_space_dim), 128),
        "bl2": 0.01 * jax.random.normal(ks[9], (encoded_space_dim,), jnp.float32),
    }


# ----------------------------------------------------------------------------
# Pure-JAX (XLA) reference of the same forward pass, for a numeric self-check.
# ----------------------------------------------------------------------------
def _conv_ref(x_nhwc, w_oihw, b, stride, padding, relu):
    cout, cin, kh, kw = w_oihw.shape
    N, H, W, C = x_nhwc.shape
    xp = jnp.pad(x_nhwc, ((0, 0), (padding, padding), (padding, padding), (0, 0)))
    Ho = (H + 2 * padding - kh) // stride + 1
    Wo = (W + 2 * padding - kw) // stride + 1
    cols = []
    for i in range(kh):
        for j in range(kw):
            cols.append(xp[:, i:i + stride * Ho:stride, j:j + stride * Wo:stride, :])
    patches = jnp.stack(cols, axis=3).reshape(N * Ho * Wo, kh * kw * C)
    wm = jnp.transpose(w_oihw, (2, 3, 1, 0)).reshape(kh * kw * cin, cout)
    y = patches @ wm + b
    if relu:
        y = jnp.maximum(y, 0.0)
    return y.reshape(N, Ho, Wo, cout)


def encoder_reference(params, x_nchw):
    eps = 1e-5
    x = jnp.transpose(x_nchw, (0, 2, 3, 1)).astype(jnp.float32)
    x = _conv_ref(x, params["w1"], params["b1"], 2, 1, True)
    scale = params["bn_gamma"] / jnp.sqrt(params["bn_var"] + eps)
    shift = params["bn_beta"] - params["bn_mean"] * scale
    x = _conv_ref(x, params["w2"] * scale[:, None, None, None],
                  params["b2"] * scale + shift, 2, 1, True)
    x = _conv_ref(x, params["w3"], params["b3"], 2, 0, True)
    x = jnp.transpose(x, (0, 3, 1, 2)).reshape(x.shape[0], -1)   # NCHW flatten
    x = jnp.maximum(x @ params["wl1"] + params["bl1"], 0.0)
    return x @ params["wl2"] + params["bl2"]


if __name__ == "__main__":
    encoded_space_dim = 4
    key = jax.random.PRNGKey(0)
    k_params, k_input = jax.random.split(key)

    params = init_params(k_params, encoded_space_dim)
    prepped = prepare_params(params)                  # one-time prep, outside the hot path

    # Input must be 28x28 so the flatten feeds Linear(3*3*32, 128).
    x = jax.random.normal(k_input, (2, 1, 28, 28), jnp.float32)  # NCHW like PyTorch

    out = jax.block_until_ready(encoder_forward(prepped, x))
    assert out.shape == (2, encoded_space_dim), out.shape
    assert out.dtype == jnp.float32

    ref = jax.block_until_ready(encoder_reference(params, x))
    err = float(jnp.max(jnp.abs(out - ref)))
    assert err < 2e-2, f"max abs err vs reference: {err}"
    print("KERNEL_OK")
</pallas_src>

<mosaic_0001>
module attributes {stable_mosaic.version = 11 : i64} {
  func.func @_encoder_kernel(%arg0: i32, %arg1: memref<1x28x28xf32, #tpu.memory_space<vmem>>, %arg2: memref<42x28xf32, #tpu.memory_space<vmem>>, %arg3: memref<84x112xf32, #tpu.memory_space<vmem>>, %arg4: memref<1x112xf32, #tpu.memory_space<vmem>>, %arg5: memref<21x14xf32, #tpu.memory_space<vmem>>, %arg6: memref<336x112xf32, #tpu.memory_space<vmem>>, %arg7: memref<1x112xf32, #tpu.memory_space<vmem>>, %arg8: memref<9x7xf32, #tpu.memory_space<vmem>>, %arg9: memref<336x96xf32, #tpu.memory_space<vmem>>, %arg10: memref<1x96xf32, #tpu.memory_space<vmem>>, %arg11: memref<288x128xf32, #tpu.memory_space<vmem>>, %arg12: memref<1x128xf32, #tpu.memory_space<vmem>>, %arg13: memref<128x4xf32, #tpu.memory_space<vmem>>, %arg14: memref<1x4xf32, #tpu.memory_space<vmem>>, %arg15: memref<1x1x4xf32, #tpu.memory_space<vmem>>) attributes {dimension_semantics = [#tpu.dimension_semantics<parallel>], iteration_bounds = array<i64: 2>, scalar_prefetch = 0 : i64, scratch_operands = 0 : i64, tpu.core_type = #tpu.core_type<tc>, window_params = [{transform_indices = @transform_0, window_bounds = array<i64: 1, 28, 28>}, {pipeline_mode = #tpu.pipeline_mode<synchronous>, transform_indices = @transform_1, window_bounds = array<i64: 42, 28>}, {pipeline_mode = #tpu.pipeline_mode<synchronous>, transform_indices = @transform_2, window_bounds = array<i64: 84, 112>}, {pipeline_mode = #tpu.pipeline_mode<synchronous>, transform_indices = @transform_3, window_bounds = array<i64: 1, 112>}, {pipeline_mode = #tpu.pipeline_mode<synchronous>, transform_indices = @transform_4, window_bounds = array<i64: 21, 14>}, {pipeline_mode = #tpu.pipeline_mode<synchronous>, transform_indices = @transform_5, window_bounds = array<i64: 336, 112>}, {pipeline_mode = #tpu.pipeline_mode<synchronous>, transform_indices = @transform_6, window_bounds = array<i64: 1, 112>}, {pipeline_mode = #tpu.pipeline_mode<synchronous>, transform_indices = @transform_7, window_bounds = array<i64: 9, 7>}, {pipeline_mode = #tpu.pipeline_mode<synchronous>, transform_indices = @transform_8, window_bounds = array<i64: 336, 96>}, {pipeline_mode = #tpu.pipeline_mode<synchronous>, transform_indices = @transform_9, window_bounds = array<i64: 1, 96>}, {pipeline_mode = #tpu.pipeline_mode<synchronous>, transform_indices = @transform_10, window_bounds = array<i64: 288, 128>}, {pipeline_mode = #tpu.pipeline_mode<synchronous>, transform_indices = @transform_11, window_bounds = array<i64: 1, 128>}, {pipeline_mode = #tpu.pipeline_mode<synchronous>, transform_indices = @transform_12, window_bounds = array<i64: 128, 4>}, {pipeline_mode = #tpu.pipeline_mode<synchronous>, transform_indices = @transform_13, window_bounds = array<i64: 1, 4>}, {transform_indices = @transform_14, window_bounds = array<i64: 1, 1, 4>}]} {
    %c0 = arith.constant 0 : index
    %c0_0 = arith.constant 0 : index
    %c0_1 = arith.constant 0 : index
    %0 = vector.load %arg1[%c0, %c0_0, %c0_1] : memref<1x28x28xf32, #tpu.memory_space<vmem>>, vector<1x28x28xf32>
    %1 = vector.shape_cast %0 : vector<1x28x28xf32> to vector<28x28xf32>
    %c0_2 = arith.constant 0 : index
    %c0_3 = arith.constant 0 : index
    %2 = vector.load %arg2[%c0_2, %c0_3] : memref<42x28xf32, #tpu.memory_space<vmem>>, vector<42x28xf32>
    %c0_4 = arith.constant 0 : index
    %c0_5 = arith.constant 0 : index
    %3 = vector.load %arg3[%c0_4, %c0_5] : memref<84x112xf32, #tpu.memory_space<vmem>>, vector<84x112xf32>
    %c0_6 = arith.constant 0 : index
    %c0_7 = arith.constant 0 : index
    %4 = vector.load %arg4[%c0_6, %c0_7] : memref<1x112xf32, #tpu.memory_space<vmem>>, vector<1x112xf32>
    %cst = arith.constant dense<0.000000e+00> : vector<42x28xf32>
    %5 = tpu.matmul %2, %1, %cst {dimension_numbers = #tpu.dot_dimension_numbers<[1], [0], [0], [1], [0, 0, 1, 1], [], []>} : vector<42x28xf32>, vector<28x28xf32>, vector<42x28xf32> -> vector<42x28xf32>
    %6 = vector.extract_strided_slice %5 {offsets = [0, 0], sizes = [14, 28], strides = [1, 1]} : vector<42x28xf32> to vector<14x28xf32>
    %7 = vector.extract_strided_slice %3 {offsets = [0, 0], sizes = [28, 112], strides = [1, 1]} : vector<84x112xf32> to vector<28x112xf32>
    %cst_8 = arith.constant dense<0.000000e+00> : vector<14x112xf32>
    %8 = tpu.matmul %6, %7, %cst_8 {dimension_numbers = #tpu.dot_dimension_numbers<[1], [0], [0], [1], [0, 0, 1, 1], [], []>} : vector<14x28xf32>, vector<28x112xf32>, vector<14x112xf32> -> vector<14x112xf32>
    %9 = vector.broadcast %4 : vector<1x112xf32> to vector<14x112xf32>
    %10 = arith.addf %9, %8 : vector<14x112xf32>
    %11 = vector.extract_strided_slice %5 {offsets = [14, 0], sizes = [14, 28], strides = [1, 1]} : vector<42x28xf32> to vector<14x28xf32>
    %12 = vector.extract_strided_slice %3 {offsets = [28, 0], sizes = [28, 112], strides = [1, 1]} : vector<84x112xf32> to vector<28x112xf32>
    %cst_9 = arith.constant dense<0.000000e+00> : vector<14x112xf32>
    %13 = tpu.matmul %11, %12, %cst_9 {dimension_numbers = #tpu.dot_dimension_numbers<[1], [0], [0], [1], [0, 0, 1, 1], [], []>} : vector<14x28xf32>, vector<28x112xf32>, vector<14x112xf32> -> vector<14x112xf32>
    %14 = arith.addf %10, %13 : vector<14x112xf32>
    %15 = vector.extract_strided_slice %5 {offsets = [28, 0], sizes = [14, 28], strides = [1, 1]} : vector<42x28xf32> to vector<14x28xf32>
    %16 = vector.extract_strided_slice %3 {offsets = [56, 0], sizes = [28, 112], strides = [1, 1]} : vector<84x112xf32> to vector<28x112xf32>
    %cst_10 = arith.constant dense<0.000000e+00> : vector<14x112xf32>
    %17 = tpu.matmul %15, %16, %cst_10 {dimension_numbers = #tpu.dot_dimension_numbers<[1], [0], [0], [1], [0, 0, 1, 1], [], []>} : vector<14x28xf32>, vector<28x112xf32>, vector<14x112xf32> -> vector<14x112xf32>
    %18 = arith.addf %14, %17 : vector<14x112xf32>
    %cst_11 = arith.constant 0.000000e+00 : f32
    %19 = vector.broadcast %cst_11 : f32 to vector<14x112xf32>
    %20 = arith.maximumf %18, %19 : vector<14x112xf32>
    %c0_12 = arith.constant 0 : index
    %c0_13 = arith.constant 0 : index
    %21 = vector.load %arg5[%c0_12, %c0_13] : memref<21x14xf32, #tpu.memory_space<vmem>>, vector<21x14xf32>
    %c0_14 = arith.constant 0 : index
    %c0_15 = arith.constant 0 : index
    %22 = vector.load %arg6[%c0_14, %c0_15] : memref<336x112xf32, #tpu.memory_space<vmem>>, vector<336x112xf32>
    %c0_16 = arith.constant 0 : index
    %c0_17 = arith.constant 0 : index
    %23 = vector.load %arg7[%c0_16, %c0_17] : memref<1x112xf32, #tpu.memory_space<vmem>>, vector<1x112xf32>
    %cst_18 = arith.constant dense<0.000000e+00> : vector<21x112xf32>
    %24 = tpu.matmul %21, %20, %cst_18 {dimension_numbers = #tpu.dot_dimension_numbers<[1], [0], [0], [1], [0, 0, 1, 1], [], []>} : vector<21x14xf32>, vector<14x112xf32>, vector<21x112xf32> -> vector<21x112xf32>
    %25 = vector.extract_strided_slice %24 {offsets = [0, 0], sizes = [7, 112], strides = [1, 1]} : vector<21x112xf32> to vector<7x112xf32>
    %26 = vector.extract_strided_slice %22 {offsets = [0, 0], sizes = [112, 112], strides = [1, 1]} : vector<336x112xf32> to vector<112x112xf32>
    %cst_19 = arith.constant dense<0.000000e+00> : vector<7x112xf32>
    %27 = tpu.matmul %25, %26, %cst_19 {dimension_numbers = #tpu.dot_dimension_numbers<[1], [0], [0], [1], [0, 0, 1, 1], [], []>} : vector<7x112xf32>, vector<112x112xf32>, vector<7x112xf32> -> vector<7x112xf32>
    %28 = vector.broadcast %23 : vector<1x112xf32> to vector<7x112xf32>
    %29 = arith.addf %28, %27 : vector<7x112xf32>
    %30 = vector.extract_strided_slice %24 {offsets = [7, 0], sizes = [7, 112], strides = [1, 1]} : vector<21x112xf32> to vector<7x112xf32>
    %31 = vector.extract_strided_slice %22 {offsets = [112, 0], sizes = [112, 112], strides = [1, 1]} : vector<336x112xf32> to vector<112x112xf32>
    %cst_20 = arith.constant dense<0.000000e+00> : vector<7x112xf32>
    %32 = tpu.matmul %30, %31, %cst_20 {dimension_numbers = #tpu.dot_dimension_numbers<[1], [0], [0], [1], [0, 0, 1, 1], [], []>} : vector<7x112xf32>, vector<112x112xf32>, vector<7x112xf32> -> vector<7x112xf32>
    %33 = arith.addf %29, %32 : vector<7x112xf32>
    %34 = vector.extract_strided_slice %24 {offsets = [14, 0], sizes = [7, 112], strides = [1, 1]} : vector<21x112xf32> to vector<7x112xf32>
    %35 = vector.extract_strided_slice %22 {offsets = [224, 0], sizes = [112, 112], strides = [1, 1]} : vector<336x112xf32> to vector<112x112xf32>
    %cst_21 = arith.constant dense<0.000000e+00> : vector<7x112xf32>
    %36 = tpu.matmul %34, %35, %cst_21 {dimension_numbers = #tpu.dot_dimension_numbers<[1], [0], [0], [1], [0, 0, 1, 1], [], []>} : vector<7x112xf32>, vector<112x112xf32>, vector<7x112xf32> -> vector<7x112xf32>
    %37 = arith.addf %33, %36 : vector<7x112xf32>
    %cst_22 = arith.constant 0.000000e+00 : f32
    %38 = vector.broadcast %cst_22 : f32 to vector<7x112xf32>
    %39 = arith.maximumf %37, %38 : vector<7x112xf32>
    %c0_23 = arith.constant 0 : index
    %c0_24 = arith.constant 0 : index
    %40 = vector.load %arg8[%c0_23, %c0_24] : memref<9x7xf32, #tpu.memory_space<vmem>>, vector<9x7xf32>
    %c0_25 = arith.constant 0 : index
    %c0_26 = arith.constant 0 : index
    %41 = vector.load %arg9[%c0_25, %c0_26] : memref<336x96xf32, #tpu.memory_space<vmem>>, vector<336x96xf32>
    %c0_27 = arith.constant 0 : index
    %c0_28 = arith.constant 0 : index
    %42 = vector.load %arg10[%c0_27, %c0_28] : memref<1x96xf32, #tpu.memory_space<vmem>>, vector<1x96xf32>
    %cst_29 = arith.constant dense<0.000000e+00> : vector<9x112xf32>
    %43 = tpu.matmul %40, %39, %cst_29 {dimension_numbers = #tpu.dot_dimension_numbers<[1], [0], [0], [1], [0, 0, 1, 1], [], []>} : vector<9x7xf32>, vector<7x112xf32>, vector<9x112xf32> -> vector<9x112xf32>
    %44 = vector.extract_strided_slice %43 {offsets = [0, 0], sizes = [3, 112], strides = [1, 1]} : vector<9x112xf32> to vector<3x112xf32>
    %45 = vector.extract_strided_slice %41 {offsets = [0, 0], sizes = [112, 96], strides = [1, 1]} : vector<336x96xf32> to vector<112x96xf32>
    %cst_30 = arith.constant dense<0.000000e+00> : vector<3x96xf32>
    %46 = tpu.matmul %44, %45, %cst_30 {dimension_numbers = #tpu.dot_dimension_numbers<[1], [0], [0], [1], [0, 0, 1, 1], [], []>} : vector<3x112xf32>, vector<112x96xf32>, vector<3x96xf32> -> vector<3x96xf32>
    %47 = vector.broadcast %42 : vector<1x96xf32> to vector<3x96xf32>
    %48 = arith.addf %47, %46 : vector<3x96xf32>
    %49 = vector.extract_strided_slice %43 {offsets = [3, 0], sizes = [3, 112], strides = [1, 1]} : vector<9x112xf32> to vector<3x112xf32>
    %50 = vector.extract_strided_slice %41 {offsets = [112, 0], sizes = [112, 96], strides = [1, 1]} : vector<336x96xf32> to vector<112x96xf32>
    %cst_31 = arith.constant dense<0.000000e+00> : vector<3x96xf32>
    %51 = tpu.matmul %49, %50, %cst_31 {dimension_numbers = #tpu.dot_dimension_numbers<[1], [0], [0], [1], [0, 0, 1, 1], [], []>} : vector<3x112xf32>, vector<112x96xf32>, vector<3x96xf32> -> vector<3x96xf32>
    %52 = arith.addf %48, %51 : vector<3x96xf32>
    %53 = vector.extract_strided_slice %43 {offsets = [6, 0], sizes = [3, 112], strides = [1, 1]} : vector<9x112xf32> to vector<3x112xf32>
    %54 = vector.extract_strided_slice %41 {offsets = [224, 0], sizes = [112, 96], strides = [1, 1]} : vector<336x96xf32> to vector<112x96xf32>
    %cst_32 = arith.constant dense<0.000000e+00> : vector<3x96xf32>
    %55 = tpu.matmul %53, %54, %cst_32 {dimension_numbers = #tpu.dot_dimension_numbers<[1], [0], [0], [1], [0, 0, 1, 1], [], []>} : vector<3x112xf32>, vector<112x96xf32>, vector<3x96xf32> -> vector<3x96xf32>
    %56 = arith.addf %52, %55 : vector<3x96xf32>
    %cst_33 = arith.constant 0.000000e+00 : f32
    %57 = vector.broadcast %cst_33 : f32 to vector<3x96xf32>
    %58 = arith.maximumf %56, %57 : vector<3x96xf32>
    %c0_34 = arith.constant 0 : index
    %c0_35 = arith.constant 0 : index
    %59 = vector.load %arg11[%c0_34, %c0_35] : memref<288x128xf32, #tpu.memory_space<vmem>>, vector<288x128xf32>
    %c0_36 = arith.constant 0 : index
    %c0_37 = arith.constant 0 : index
    %60 = vector.load %arg12[%c0_36, %c0_37] : memref<1x128xf32, #tpu.memory_space<vmem>>, vector<1x128xf32>
    %61 = vector.extract_strided_slice %58 {offsets = [0, 0], sizes = [1, 96], strides = [1, 1]} : vector<3x96xf32> to vector<1x96xf32>
    %62 = vector.extract_strided_slice %59 {offsets = [0, 0], sizes = [96, 128], strides = [1, 1]} : vector<288x128xf32> to vector<96x128xf32>
    %cst_38 = arith.constant dense<0.000000e+00> : vector<1x128xf32>
    %63 = tpu.matmul %61, %62, %cst_38 {dimension_numbers = #tpu.dot_dimension_numbers<[1], [0], [0], [1], [0, 0, 1, 1], [], []>} : vector<1x96xf32>, vector<96x128xf32>, vector<1x128xf32> -> vector<1x128xf32>
    %64 = arith.addf %60, %63 : vector<1x128xf32>
    %65 = vector.extract_strided_slice %58 {offsets = [1, 0], sizes = [1, 96], strides = [1, 1]} : vector<3x96xf32> to vector<1x96xf32>
    %66 = vector.extract_strided_slice %59 {offsets = [96, 0], sizes = [96, 128], strides = [1, 1]} : vector<288x128xf32> to vector<96x128xf32>
    %cst_39 = arith.constant dense<0.000000e+00> : vector<1x128xf32>
    %67 = tpu.matmul %65, %66, %cst_39 {dimension_numbers = #tpu.dot_dimension_numbers<[1], [0], [0], [1], [0, 0, 1, 1], [], []>} : vector<1x96xf32>, vector<96x128xf32>, vector<1x128xf32> -> vector<1x128xf32>
    %68 = arith.addf %64, %67 : vector<1x128xf32>
    %69 = vector.extract_strided_slice %58 {offsets = [2, 0], sizes = [1, 96], strides = [1, 1]} : vector<3x96xf32> to vector<1x96xf32>
    %70 = vector.extract_strided_slice %59 {offsets = [192, 0], sizes = [96, 128], strides = [1, 1]} : vector<288x128xf32> to vector<96x128xf32>
    %cst_40 = arith.constant dense<0.000000e+00> : vector<1x128xf32>
    %71 = tpu.matmul %69, %70, %cst_40 {dimension_numbers = #tpu.dot_dimension_numbers<[1], [0], [0], [1], [0, 0, 1, 1], [], []>} : vector<1x96xf32>, vector<96x128xf32>, vector<1x128xf32> -> vector<1x128xf32>
    %72 = arith.addf %68, %71 : vector<1x128xf32>
    %cst_41 = arith.constant 0.000000e+00 : f32
    %73 = vector.broadcast %cst_41 : f32 to vector<1x128xf32>
    %74 = arith.maximumf %72, %73 : vector<1x128xf32>
    %c0_42 = arith.constant 0 : index
    %c0_43 = arith.constant 0 : index
    %75 = vector.load %arg13[%c0_42, %c0_43] : memref<128x4xf32, #tpu.memory_space<vmem>>, vector<128x4xf32>
    %cst_44 = arith.constant dense<0.000000e+00> : vector<1x4xf32>
    %76 = tpu.matmul %74, %75, %cst_44 {dimension_numbers = #tpu.dot_dimension_numbers<[1], [0], [0], [1], [0, 0, 1, 1], [], []>} : vector<1x128xf32>, vector<128x4xf32>, vector<1x4xf32> -> vector<1x4xf32>
    %c0_45 = arith.constant 0 : index
    %c0_46 = arith.constant 0 : index
    %77 = vector.load %arg14[%c0_45, %c0_46] : memref<1x4xf32, #tpu.memory_space<vmem>>, vector<1x4xf32>
    %78 = arith.addf %76, %77 : vector<1x4xf32>
    %79 = vector.shape_cast %78 : vector<1x4xf32> to vector<1x1x4xf32>
    %c0_47 = arith.constant 0 : index
    %c0_48 = arith.constant 0 : index
    %c0_49 = arith.constant 0 : index
    %80 = vector.load %arg15[%c0_47, %c0_48, %c0_49] : memref<1x1x4xf32, #tpu.memory_space<vmem>>, vector<1x1x4xf32>
    tpu.vector_store %arg15[%c0_47, %c0_48, %c0_49], %79 {strides = array<i32>} : memref<1x1x4xf32, #tpu.memory_space<vmem>>, vector<1x1x4xf32>,
    return
  }
  func.func @transform_0(%arg0: i32) -> (i32, i32, i32) {
    %c0_i32 = arith.constant 0 : i32
    %c0_i32_0 = arith.constant 0 : i32
    %c0_i32_1 = arith.constant 0 : i32
    return %arg0, %c0_i32, %c0_i32_0 : i32, i32, i32
  }
  func.func @transform_1(%arg0: i32) -> (i32, i32) {
    %c0_i32 = arith.constant 0 : i32
    %c0_i32_0 = arith.constant 0 : i32
    %c0_i32_1 = arith.constant 0 : i32
    return %c0_i32, %c0_i32_0 : i32, i32
  }
  func.func @transform_2(%arg0: i32) -> (i32, i32) {
    %c0_i32 = arith.constant 0 : i32
    %c0_i32_0 = arith.constant 0 : i32
    %c0_i32_1 = arith.constant 0 : i32
    return %c0_i32, %c0_i32_0 : i32, i32
  }
  func.func @transform_3(%arg0: i32) -> (i32, i32) {
    %c0_i32 = arith.constant 0 : i32
    %c0_i32_0 = arith.constant 0 : i32
    %c0_i32_1 = arith.constant 0 : i32
    return %c0_i32, %c0_i32_0 : i32, i32
  }
  func.func @transform_4(%arg0: i32) -> (i32, i32) {
    %c0_i32 = arith.constant 0 : i32
    %c0_i32_0 = arith.constant 0 : i32
    %c0_i32_1 = arith.constant 0 : i32
    return %c0_i32, %c0_i32_0 : i32, i32
  }
  func.func @transform_5(%arg0: i32) -> (i32, i32) {
    %c0_i32 = arith.constant 0 : i32
    %c0_i32_0 = arith.constant 0 : i32
    %c0_i32_1 = arith.constant 0 : i32
    return %c0_i32, %c0_i32_0 : i32, i32
  }
  func.func @transform_6(%arg0: i32) -> (i32, i32) {
    %c0_i32 = arith.constant 0 : i32
    %c0_i32_0 = arith.constant 0 : i32
    %c0_i32_1 = arith.constant 0 : i32
    return %c0_i32, %c0_i32_0 : i32, i32
  }
  func.func @transform_7(%arg0: i32) -> (i32, i32) {
    %c0_i32 = arith.constant 0 : i32
    %c0_i32_0 = arith.constant 0 : i32
    %c0_i32_1 = arith.constant 0 : i32
    return %c0_i32, %c0_i32_0 : i32, i32
  }
  func.func @transform_8(%arg0: i32) -> (i32, i32) {
    %c0_i32 = arith.constant 0 : i32
    %c0_i32_0 = arith.constant 0 : i32
    %c0_i32_1 = arith.constant 0 : i32
    return %c0_i32, %c0_i32_0 : i32, i32
  }
  func.func @transform_9(%arg0: i32) -> (i32, i32) {
    %c0_i32 = arith.constant 0 : i32
    %c0_i32_0 = arith.constant 0 : i32
    %c0_i32_1 = arith.constant 0 : i32
    return %c0_i32, %c0_i32_0 : i32, i32
  }
  func.func @transform_10(%arg0: i32) -> (i32, i32) {
    %c0_i32 = arith.constant 0 : i32
    %c0_i32_0 = arith.constant 0 : i32
    %c0_i32_1 = arith.constant 0 : i32
    return %c0_i32, %c0_i32_0 : i32, i32
  }
  func.func @transform_11(%arg0: i32) -> (i32, i32) {
    %c0_i32 = arith.constant 0 : i32
    %c0_i32_0 = arith.constant 0 : i32
    %c0_i32_1 = arith.constant 0 : i32
    return %c0_i32, %c0_i32_0 : i32, i32
  }
  func.func @transform_12(%arg0: i32) -> (i32, i32) {
    %c0_i32 = arith.constant 0 : i32
    %c0_i32_0 = arith.constant 0 : i32
    %c0_i32_1 = arith.constant 0 : i32
    return %c0_i32, %c0_i32_0 : i32, i32
  }
  func.func @transform_13(%arg0: i32) -> (i32, i32) {
    %c0_i32 = arith.constant 0 : i32
    %c0_i32_0 = arith.constant 0 : i32
    %c0_i32_1 = arith.constant 0 : i32
    return %c0_i32, %c0_i32_0 : i32, i32
  }
  func.func @transform_14(%arg0: i32) -> (i32, i32, i32) {
    %c0_i32 = arith.constant 0 : i32
    %c0_i32_0 = arith.constant 0 : i32
    %c0_i32_1 = arith.constant 0 : i32
    return %arg0, %c0_i32, %c0_i32_0 : i32, i32, i32
  }
}

</mosaic_0001>

<llo_original>
// kernel: encoder_forward.1
$region0: #{encoder_forward.1}
  #allocation0 [shape = 'u32[]', space=smem, size = 0x4, offset = 0x4, fixed_abs, tag = 'smem constant byte address 0x4 - core index']
  #allocation1 [shape = 'u32[144,128]{1,0:T(1,128)}', space=vmem, size = 0x12000, scoped, tag = 'internal scratch']
  %s0 = inlined_call_operand.vmem [shape: f32[2,28,28], index: 0, kind: input, shape index: {}]
  %s1 = inlined_call_operand.vmem [shape: f32[42,28], index: 1, kind: input, shape index: {}]
  %s2 = inlined_call_operand.vmem [shape: f32[84,112], index: 2, kind: input, shape index: {}]
  %s3 = inlined_call_operand.vmem [shape: f32[1,112], index: 3, kind: input, shape index: {}]
  %s4 = inlined_call_operand.vmem [shape: f32[21,14], index: 4, kind: input, shape index: {}]
  %s5 = inlined_call_operand.vmem [shape: f32[336,112], index: 5, kind: input, shape index: {}]
  %s6 = inlined_call_operand.vmem [shape: f32[1,112], index: 6, kind: input, shape index: {}]
  %s7 = inlined_call_operand.vmem [shape: f32[9,7], index: 7, kind: input, shape index: {}]
  %s8 = inlined_call_operand.vmem [shape: f32[336,96], index: 8, kind: input, shape index: {}]
  %s9 = inlined_call_operand.vmem [shape: f32[1,96], index: 9, kind: input, shape index: {}]
  %s10 = inlined_call_operand.vmem [shape: f32[288,128], index: 10, kind: input, shape index: {}]
  %s11 = inlined_call_operand.vmem [shape: f32[1,128], index: 11, kind: input, shape index: {}]
  %s12 = inlined_call_operand.vmem [shape: f32[128,4], index: 12, kind: input, shape index: {}]
  %s13 = inlined_call_operand.vmem [shape: f32[1,4], index: 13, kind: input, shape index: {}]
  %s14 = inlined_call_operand.hbm [shape: f32[2,1,4], index: 14, kind: output, shape index: {}]
  %s15 = sld [smem:[#allocation0]]
  $region89: #{encoder_forward.1} parent=0
    _
  %s17 = ssub.s32 1, %s15
  %s18 = scalar_select 0, %s17, %s15
  $region1: #{encoder_forward.1} parent=0
    #allocation2 [shape = 'u8[1024]{0}', space=vmem, size = 0x400, scoped, tag = 'output window, operand 0']
    #allocation3 [shape = 's32[2]{0}', space=sflag, size = 0x8, scoped, tag = 'scoped memory for encoder_forward.1']
    %19 = vsyncpa [#allocation3], 0
    %s20 = scalar_lea.sflag [#allocation3], 1
    %21 = vsyncpa %s20, 0
    loop: start=0, step=1, limit=4
    $region2: #{encoder_forward.1} parent=1 // loop_pre_header
      _
    $region3: #{encoder_forward.1} parent=1 // loop_header
      %s23 = sphi 0, %s27
      %p24 = scmp.ge.s32.totalorder %s23, 4
      %s33 = sphi 0, %s35
      %s36 = sphi 0, %s33
      %s37 = sphi 0, %s36
      %s53 = sphi 0, %s37
      %s57 = sphi 0, %s57
      %s59 = sphi 0, %s57
      %s60 = sphi 0, %s59
      %s74 = sphi 0, %s60
      %s78 = sphi 0, %s78
      %s80 = sphi 0, %s78
      %s81 = sphi 0, %s80
      %s95 = sphi 0, %s81
      %s99 = sphi 0, %s99
      %s101 = sphi 0, %s99
      %s102 = sphi 0, %s101
      %s116 = sphi 0, %s102
      %s120 = sphi 0, %s120
      %s122 = sphi 0, %s120
      %s123 = sphi 0, %s122
      %s137 = sphi 0, %s123
      %s141 = sphi 0, %s141
      %s143 = sphi 0, %s141
      %s144 = sphi 0, %s143
      %s158 = sphi 0, %s144
      %s162 = sphi 0, %s162
      %s164 = sphi 0, %s162
      %s165 = sphi 0, %s164
      %s179 = sphi 0, %s165
      %s183 = sphi 0, %s183
      %s185 = sphi 0, %s183
      %s186 = sphi 0, %s185
      %s200 = sphi 0, %s186
      %s204 = sphi 0, %s204
      %s206 = sphi 0, %s204
      %s207 = sphi 0, %s206
      %s221 = sphi 0, %s207
      %s225 = sphi 0, %s225
      %s227 = sphi 0, %s225
      %s228 = sphi 0, %s227
      %s242 = sphi 0, %s228
      %s246 = sphi 0, %s246
      %s248 = sphi 0, %s246
      %s249 = sphi 0, %s248
      %s263 = sphi 0, %s249
      %s267 = sphi 0, %s267
      %s269 = sphi 0, %s267
      %s270 = sphi 0, %s269
      %s284 = sphi 0, %s270
      %s288 = sphi 0, %s288
      %s290 = sphi 0, %s288
      %s291 = sphi 0, %s290
      %s305 = sphi 0, %s291
      %s309 = sphi 0, %s309
      %s311 = sphi 0, %s309
      %s312 = sphi 0, %s311
      %s326 = sphi 0, %s312
      %s332 = sphi 0, %s334
      %s335 = sphi 0, %s332
      %s336 = sphi 0, %s335
      %s352 = sphi 0, %s336
    $region4: #{encoder_forward.1} parent=1 // loop_header_branch
      %26 = sbr.rel (%p24) target = $region8
    $region5: #{encoder_forward.1} parent=1 // loop_body
      %s28 = ssub.s32 %s23, 1
      %s29 = ssub.s32 %s23, 2
      %s30 = sadd.s32 %s23, 1
      %s31 = ssub.s32 %s23, %s30
      %p32 = scmp.eq.s32.totalorder %s31, 0
      %s34 = sadd.s32 %s33, 1
      %s35 = scalar_select %p32, %s33, %s34
      %p38 = pneg %p32
      %p39 = scmp.eq.s32.totalorder %s23, 1
      %p40 = por %p38, %p39
      %p41 = scmp.ne.s32.totalorder %s33, %s36
      %p42 = scmp.eq.s32.totalorder %s23, 0
      %p43 = por %p41, %p42
      %p44 = scmp.ne.s32.totalorder %s33, %s36
      %p45 = scmp.eq.s32.totalorder %s28, 1
      %p46 = por %p44, %p45
      %p47 = scmp.ne.s32.totalorder %s36, %s37
      %p48 = scmp.eq.s32.totalorder %s28, 0
      %p49 = por %p47, %p48
      %p50 = scmp.ne.s32.totalorder %s36, %s37
      %p51 = scmp.eq.s32.totalorder %s29, 1
      %p52 = por %p50, %p51
      %p54 = scmp.ne.s32.totalorder %s37, %s53
      %p55 = scmp.eq.s32.totalorder %s29, 0
      %p56 = por %p54, %p55
      %s58 = sadd.s32 %s57, 1
      %p61 = scmp.eq.s32.totalorder %s23, 1
      %p62 = scmp.ne.s32.totalorder %s57, %s59
      %p63 = scmp.eq.s32.totalorder %s23, 0
      %p64 = por %p62, %p63
      %p65 = scmp.ne.s32.totalorder %s57, %s59
      %p66 = scmp.eq.s32.totalorder %s28, 1
      %p67 = por %p65, %p66
      %p68 = scmp.ne.s32.totalorder %s59, %s60
      %p69 = scmp.eq.s32.totalorder %s28, 0
      %p70 = por %p68, %p69
      %p71 = scmp.ne.s32.totalorder %s59, %s60
      %p72 = scmp.eq.s32.totalorder %s29, 1
      %p73 = por %p71, %p72
      %p75 = scmp.ne.s32.totalorder %s60, %s74
      %p76 = scmp.eq.s32.totalorder %s29, 0
      %p77 = por %p75, %p76
      %s79 = sadd.s32 %s78, 1
      %p82 = scmp.eq.s32.totalorder %s23, 1
      %p83 = scmp.ne.s32.totalorder %s78, %s80
      %p84 = scmp.eq.s32.totalorder %s23, 0
      %p85 = por %p83, %p84
      %p86 = scmp.ne.s32.totalorder %s78, %s80
      %p87 = scmp.eq.s32.totalorder %s28, 1
      %p88 = por %p86, %p87
      %p89 = scmp.ne.s32.totalorder %s80, %s81
      %p90 = scmp.eq.s32.totalorder %s28, 0
      %p91 = por %p89, %p90
      %p92 = scmp.ne.s32.totalorder %s80, %s81
      %p93 = scmp.eq.s32.totalorder %s29, 1
      %p94 = por %p92, %p93
      %p96 = scmp.ne.s32.totalorder %s81, %s95
      %p97 = scmp.eq.s32.totalorder %s29, 0
      %p98 = por %p96, %p97
      %s100 = sadd.s32 %s99, 1
      %p103 = scmp.eq.s32.totalorder %s23, 1
      %p104 = scmp.ne.s32.totalorder %s99, %s101
      %p105 = scmp.eq.s32.totalorder %s23, 0
      %p106 = por %p104, %p105
      %p107 = scmp.ne.s32.totalorder %s99, %s101
      %p108 = scmp.eq.s32.totalorder %s28, 1
      %p109 = por %p107, %p108
      %p110 = scmp.ne.s32.totalorder %s101, %s102
      %p111 = scmp.eq.s32.totalorder %s28, 0
      %p112 = por %p110, %p111
      %p113 = scmp.ne.s32.totalorder %s101, %s102
      %p114 = scmp.eq.s32.totalorder %s29, 1
      %p115 = por %p113, %p114
      %p117 = scmp.ne.s32.totalorder %s102, %s116
      %p118 = scmp.eq.s32.totalorder %s29, 0
      %p119 = por %p117, %p118
      %s121 = sadd.s32 %s120, 1
      %p124 = scmp.eq.s32.totalorder %s23, 1
      %p125 = scmp.ne.s32.totalorder %s120, %s122
      %p126 = scmp.eq.s32.totalorder %s23, 0
      %p127 = por %p125, %p126
      %p128 = scmp.ne.s32.totalorder %s120, %s122
      %p129 = scmp.eq.s32.totalorder %s28, 1
      %p130 = por %p128, %p129
      %p131 = scmp.ne.s32.totalorder %s122, %s123
      %p132 = scmp.eq.s32.totalorder %s28, 0
      %p133 = por %p131, %p132
      %p134 = scmp.ne.s32.totalorder %s122, %s123
      %p135 = scmp.eq.s32.totalorder %s29, 1
      %p136 = por %p134, %p135
      %p138 = scmp.ne.s32.totalorder %s123, %s137
      %p139 = scmp.eq.s32.totalorder %s29, 0
      %p140 = por %p138, %p139
      %s142 = sadd.s32 %s141, 1
      %p145 = scmp.eq.s32.totalorder %s23, 1
      %p146 = scmp.ne.s32.totalorder %s141, %s143
      %p147 = scmp.eq.s32.totalorder %s23, 0
      %p148 = por %p146, %p147
      %p149 = scmp.ne.s32.totalorder %s141, %s143
      %p150 = scmp.eq.s32.totalorder %s28, 1
      %p151 = por %p149, %p150
      %p152 = scmp.ne.s32.totalorder %s143, %s144
      %p153 = scmp.eq.s32.totalorder %s28, 0
      %p154 = por %p152, %p153
      %p155 = scmp.ne.s32.totalorder %s143, %s144
      %p156 = scmp.eq.s32.totalorder %s29, 1
      %p157 = por %p155, %p156
      %p159 = scmp.ne.s32.totalorder %s144, %s158
      %p160 = scmp.eq.s32.totalorder %s29, 0
      %p161 = por %p159, %p160
      %s163 = sadd.s32 %s162, 1
      %p166 = scmp.eq.s32.totalorder %s23, 1
      %p167 = scmp.ne.s32.totalorder %s162, %s164
      %p168 = scmp.eq.s32.totalorder %s23, 0
      %p169 = por %p167, %p168
      %p170 = scmp.ne.s32.totalorder %s162, %s164
      %p171 = scmp.eq.s32.totalorder %s28, 1
      %p172 = por %p170, %p171
      %p173 = scmp.ne.s32.totalorder %s164, %s165
      %p174 = scmp.eq.s32.totalorder %s28, 0
      %p175 = por %p173, %p174
      %p176 = scmp.ne.s32.totalorder %s164, %s165
      %p177 = scmp.eq.s32.totalorder %s29, 1
      %p178 = por %p176, %p177
      %p180 = scmp.ne.s32.totalorder %s165, %s179
      %p181 = scmp.eq.s32.totalorder %s29, 0
      %p182 = por %p180, %p181
      %s184 = sadd.s32 %s183, 1
      %p187 = scmp.eq.s32.totalorder %s23, 1
      %p188 = scmp.ne.s32.totalorder %s183, %s185
      %p189 = scmp.eq.s32.totalorder %s23, 0
      %p190 = por %p188, %p189
      %p191 = scmp.ne.s32.totalorder %s183, %s185
      %p192 = scmp.eq.s32.totalorder %s28, 1
      %p193 = por %p191, %p192
      %p194 = scmp.ne.s32.totalorder %s185, %s186
      %p195 = scmp.eq.s32.totalorder %s28, 0
      %p196 = por %p194, %p195
      %p197 = scmp.ne.s32.totalorder %s185, %s186
      %p198 = scmp.eq.s32.totalorder %s29, 1
      %p199 = por %p197, %p198
      %p201 = scmp.ne.s32.totalorder %s186, %s200
      %p202 = scmp.eq.s32.totalorder %s29, 0
      %p203 = por %p201, %p202
      %s205 = sadd.s32 %s204, 1
      %p208 = scmp.eq.s32.totalorder %s23, 1
      %p209 = scmp.ne.s32.totalorder %s204, %s206
      %p210 = scmp.eq.s32.totalorder %s23, 0
      %p211 = por %p209, %p210
      %p212 = scmp.ne.s32.totalorder %s204, %s206
      %p213 = scmp.eq.s32.totalorder %s28, 1
      %p214 = por %p212, %p213
      %p215 = scmp.ne.s32.totalorder %s206, %s207
      %p216 = scmp.eq.s32.totalorder %s28, 0
      %p217 = por %p215, %p216
      %p218 = scmp.ne.s32.totalorder %s206, %s207
      %p219 = scmp.eq.s32.totalorder %s29, 1
      %p220 = por %p218, %p219
      %p222 = scmp.ne.s32.totalorder %s207, %s221
      %p223 = scmp.eq.s32.totalorder %s29, 0
      %p224 = por %p222, %p223
      %s226 = sadd.s32 %s225, 1
      %p229 = scmp.eq.s32.totalorder %s23, 1
      %p230 = scmp.ne.s32.totalorder %s225, %s227
      %p231 = scmp.eq.s32.totalorder %s23, 0
      %p232 = por %p230, %p231
      %p233 = scmp.ne.s32.totalorder %s225, %s227
      %p234 = scmp.eq.s32.totalorder %s28, 1
      %p235 = por %p233, %p234
      %p236 = scmp.ne.s32.totalorder %s227, %s228
      %p237 = scmp.eq.s32.totalorder %s28, 0
      %p238 = por %p236, %p237
      %p239 = scmp.ne.s32.totalorder %s227, %s228
      %p240 = scmp.eq.s32.totalorder %s29, 1
      %p241 = por %p239, %p240
      %p243 = scmp.ne.s32.totalorder %s228, %s242
      %p244 = scmp.eq.s32.totalorder %s29, 0
      %p245 = por %p243, %p244
      %s247 = sadd.s32 %s246, 1
      %p250 = scmp.eq.s32.totalorder %s23, 1
      %p251 = scmp.ne.s32.totalorder %s246, %s248
      %p252 = scmp.eq.s32.totalorder %s23, 0
      %p253 = por %p251, %p252
      %p254 = scmp.ne.s32.totalorder %s246, %s248
      %p255 = scmp.eq.s32.totalorder %s28, 1
      %p256 = por %p254, %p255
      %p257 = scmp.ne.s32.totalorder %s248, %s249
      %p258 = scmp.eq.s32.totalorder %s28, 0
      %p259 = por %p257, %p258
      %p260 = scmp.ne.s32.totalorder %s248, %s249
      %p261 = scmp.eq.s32.totalorder %s29, 1
      %p262 = por %p260, %p261
      %p264 = scmp.ne.s32.totalorder %s249, %s263
      %p265 = scmp.eq.s32.totalorder %s29, 0
      %p266 = por %p264, %p265
      %s268 = sadd.s32 %s267, 1
      %p271 = scmp.eq.s32.totalorder %s23, 1
      %p272 = scmp.ne.s32.totalorder %s267, %s269
      %p273 = scmp.eq.s32.totalorder %s23, 0
      %p274 = por %p272, %p273
      %p275 = scmp.ne.s32.totalorder %s267, %s269
      %p276 = scmp.eq.s32.totalorder %s28, 1
      %p277 = por %p275, %p276
      %p278 = scmp.ne.s32.totalorder %s269, %s270
      %p279 = scmp.eq.s32.totalorder %s28, 0
      %p280 = por %p278, %p279
      %p281 = scmp.ne.s32.totalorder %s269, %s270
      %p282 = scmp.eq.s32.totalorder %s29, 1
      %p283 = por %p281, %p282
      %p285 = scmp.ne.s32.totalorder %s270, %s284
      %p286 = scmp.eq.s32.totalorder %s29, 0
      %p287 = por %p285, %p286
      %s289 = sadd.s32 %s288, 1
      %p292 = scmp.eq.s32.totalorder %s23, 1
      %p293 = scmp.ne.s32.totalorder %s288, %s290
      %p294 = scmp.eq.s32.totalorder %s23, 0
      %p295 = por %p293, %p294
      %p296 = scmp.ne.s32.totalorder %s288, %s290
      %p297 = scmp.eq.s32.totalorder %s28, 1
      %p298 = por %p296, %p297
      %p299 = scmp.ne.s32.totalorder %s290, %s291
      %p300 = scmp.eq.s32.totalorder %s28, 0
      %p301 = por %p299, %p300
      %p302 = scmp.ne.s32.totalorder %s290, %s291
      %p303 = scmp.eq.s32.totalorder %s29, 1
      %p304 = por %p302, %p303
      %p306 = scmp.ne.s32.totalorder %s291, %s305
      %p307 = scmp.eq.s32.totalorder %s29, 0
      %p308 = por %p306, %p307
      %s310 = sadd.s32 %s309, 1
      %p313 = scmp.eq.s32.totalorder %s23, 1
      %p314 = scmp.ne.s32.totalorder %s309, %s311
      %p315 = scmp.eq.s32.totalorder %s23, 0
      %p316 = por %p314, %p315
      %p317 = scmp.ne.s32.totalorder %s309, %s311
      %p318 = scmp.eq.s32.totalorder %s28, 1
      %p319 = por %p317, %p318
      %p320 = scmp.ne.s32.totalorder %s311, %s312
      %p321 = scmp.eq.s32.totalorder %s28, 0
      %p322 = por %p320, %p321
      %p323 = scmp.ne.s32.totalorder %s311, %s312
      %p324 = scmp.eq.s32.totalorder %s29, 1
      %p325 = por %p323, %p324
      %p327 = scmp.ne.s32.totalorder %s312, %s326
      %p328 = scmp.eq.s32.totalorder %s29, 0
      %p329 = por %p327, %p328
      %s330 = ssub.s32 %s23, %s30
      %p331 = scmp.eq.s32.totalorder %s330, 0
      %s333 = sadd.s32 %s332, 1
      %s334 = scalar_select %p331, %s332, %s333
      %p337 = pneg %p331
      %p338 = scmp.eq.s32.totalorder %s23, 1
      %p339 = por %p337, %p338
      %p340 = scmp.ne.s32.totalorder %s332, %s335
      %p341 = scmp.eq.s32.totalorder %s23, 0
      %p342 = por %p340, %p341
      %p343 = scmp.ne.s32.totalorder %s332, %s335
      %p344 = scmp.eq.s32.totalorder %s28, 1
      %p345 = por %p343, %p344
      %p346 = scmp.ne.s32.totalorder %s335, %s336
      %p347 = scmp.eq.s32.totalorder %s28, 0
      %p348 = por %p346, %p347
      %p349 = scmp.ne.s32.totalorder %s335, %s336
      %p350 = scmp.eq.s32.totalorder %s29, 1
      %p351 = por %p349, %p350
      %p353 = scmp.ne.s32.totalorder %s336, %s352
      %p354 = scmp.eq.s32.totalorder %s29, 0
      %p355 = por %p353, %p354
      %p356 = scmp.le.s32.totalorder 1, %s23
      %p357 = scmp.lt.s32.totalorder %s23, 3
      %p358 = pnand %p356, %p357
      %p359 = pneg %p358
      // Predicated region
      $region9: #{encoder_forward.1} parent=5 // pred_check
        _
      $region10: #{encoder_forward.1} parent=5 // pred_check_branch
        %361 = sbr.rel (%p358) target = $region12
      $region11: #{encoder_forward.1} parent=5 // pred_region
        %s362 = ssub.s32 %s23, 1
        // Predicated region
        $region13: #{encoder_forward.1} parent=11 // pred_check
          %p363 = pneg %p70
        $region14: #{encoder_forward.1} parent=11 // pred_check_branch
          %365 = sbr.rel (%p363) target = $region16
        $region15: #{encoder_forward.1} parent=11 // pred_region
          _
        $region16: #{encoder_forward.1} parent=11 // pred_fallthru
          _
        // Predicated region
        $region17: #{encoder_forward.1} parent=11 // pred_check
          %p366 = pneg %p91
        $region18: #{encoder_forward.1} parent=11 // pred_check_branch
          %368 = sbr.rel (%p366) target = $region20
        $region19: #{encoder_forward.1} parent=11 // pred_region
          _
        $region20: #{encoder_forward.1} parent=11 // pred_fallthru
          _
        // Predicated region
        $region21: #{encoder_forward.1} parent=11 // pred_check
          %p369 = pneg %p112
        $region22: #{encoder_forward.1} parent=11 // pred_check_branch
          %371 = sbr.rel (%p369) target = $region24
        $region23: #{encoder_forward.1} parent=11 // pred_region
          _
        $region24: #{encoder_forward.1} parent=11 // pred_fallthru
          _
        // Predicated region
        $region25: #{encoder_forward.1} parent=11 // pred_check
          %p372 = pneg %p133
        $region26: #{encoder_forward.1} parent=11 // pred_check_branch
          %374 = sbr.rel (%p372) target = $region28
        $region27: #{encoder_forward.1} parent=11 // pred_region
          _
        $region28: #{encoder_forward.1} parent=11 // pred_fallthru
          _
        // Predicated region
        $region29: #{encoder_forward.1} parent=11 // pred_check
          %p375 = pneg %p154
        $region30: #{encoder_forward.1} parent=11 // pred_check_branch
          %377 = sbr.rel (%p375) target = $region32
        $region31: #{encoder_forward.1} parent=11 // pred_region
          _
        $region32: #{encoder_forward.1} parent=11 // pred_fallthru
          _
        // Predicated region
        $region33: #{encoder_forward.1} parent=11 // pred_check
          %p378 = pneg %p175
        $region34: #{encoder_forward.1} parent=11 // pred_check_branch
          %380 = sbr.rel (%p378) target = $region36
        $region35: #{encoder_forward.1} parent=11 // pred_region
          _
        $region36: #{encoder_forward.1} parent=11 // pred_fallthru
          _
        // Predicated region
        $region37: #{encoder_forward.1} parent=11 // pred_check
          %p381 = pneg %p196
        $region38: #{encoder_forward.1} parent=11 // pred_check_branch
          %383 = sbr.rel (%p381) target = $region40
        $region39: #{encoder_forward.1} parent=11 // pred_region
          _
        $region40: #{encoder_forward.1} parent=11 // pred_fallthru
          _
        // Predicated region
        $region41: #{encoder_forward.1} parent=11 // pred_check
          %p384 = pneg %p217
        $region42: #{encoder_forward.1} parent=11 // pred_check_branch
          %386 = sbr.rel (%p384) target = $region44
        $region43: #{encoder_forward.1} parent=11 // pred_region
          _
        $region44: #{encoder_forward.1} parent=11 // pred_fallthru
          _
        // Predicated region
        $region45: #{encoder_forward.1} parent=11 // pred_check
          %p387 = pneg %p238
        $region46: #{encoder_forward.1} parent=11 // pred_check_branch
          %389 = sbr.rel (%p387) target = $region48
        $region47: #{encoder_forward.1} parent=11 // pred_region
          _
        $region48: #{encoder_forward.1} parent=11 // pred_fallthru
          _
        // Predicated region
        $region49: #{encoder_forward.1} parent=11 // pred_check
          %p390 = pneg %p259
        $region50: #{encoder_forward.1} parent=11 // pred_check_branch
          %392 = sbr.rel (%p390) target = $region52
        $region51: #{encoder_forward.1} parent=11 // pred_region
          _
        $region52: #{encoder_forward.1} parent=11 // pred_fallthru
          _
        // Predicated region
        $region53: #{encoder_forward.1} parent=11 // pred_check
          %p393 = pneg %p280
        $region54: #{encoder_forward.1} parent=11 // pred_check_branch
          %395 = sbr.rel (%p393) target = $region56
        $region55: #{encoder_forward.1} parent=11 // pred_region
          _
        $region56: #{encoder_forward.1} parent=11 // pred_fallthru
          _
        // Predicated region
        $region57: #{encoder_forward.1} parent=11 // pred_check
          %p396 = pneg %p301
        $region58: #{encoder_forward.1} parent=11 // pred_check_branch
          %398 = sbr.rel (%p396) target = $region60
        $region59: #{encoder_forward.1} parent=11 // pred_region
          _
        $region60: #{encoder_forward.1} parent=11 // pred_fallthru
          _
        // Predicated region
        $region61: #{encoder_forward.1} parent=11 // pred_check
          %p399 = pneg %p322
        $region62: #{encoder_forward.1} parent=11 // pred_check_branch
          %401 = sbr.rel (%p399) target = $region64
        $region63: #{encoder_forward.1} parent=11 // pred_region
          _
        $region64: #{encoder_forward.1} parent=11 // pred_fallthru
          _
      $region12: #{encoder_forward.1} parent=5 // pred_fallthru
        _
      %p402 = scmp.lt.s32.totalorder %s23, 2
      // Predicated region
      $region65: #{encoder_forward.1} parent=5 // pred_check
        %p403 = pneg %p402
      $region66: #{encoder_forward.1} parent=5 // pred_check_branch
        %405 = sbr.rel (%p403) target = $region68
      $region67: #{encoder_forward.1} parent=5 // pred_region
        // Predicated region
        $region69: #{encoder_forward.1} parent=67 // pred_check
          %p406 = pneg %p43
        $region70: #{encoder_forward.1} parent=67 // pred_check_branch
          %408 = sbr.rel (%p406) target = $region72
        $region71: #{encoder_forward.1} parent=67 // pred_region
          %p409 = scmp.lt.s32.totalorder %s23, 1
          %s410 = scalar_select %p409, %s23, 1
          %s411 = smul.addr %s410, 4
          %s412 = smul.addr %s411, 8
          %s413 = scalar_lea.vmem %s0, %s412
        $region72: #{encoder_forward.1} parent=67 // pred_fallthru
          _
      $region68: #{encoder_forward.1} parent=5 // pred_fallthru
        _
      %p414 = scmp.le.s32.totalorder 1, %s23
      %p415 = scmp.lt.s32.totalorder %s23, 3
      %p416 = pnand %p414, %p415
      %p417 = pneg %p416
      // Predicated region
      $region73: #{encoder_forward.1} parent=5 // pred_check
        _
      $region74: #{encoder_forward.1} parent=5 // pred_check_branch
        %419 = sbr.rel (%p416) target = $region76
      $region75: #{encoder_forward.1} parent=5 // pred_region
        %s420 = ssub.s32 %s23, 1
        %p421 = scmp.lt.s32.totalorder %s28, 1
        %s422 = scalar_select %p421, %s28, 1
        %s423 = smul.addr %s422, 4
        %s424 = smul.addr %s423, 8
        %s425 = scalar_lea.vmem %s0, %s424
        %p426 = pneg %p49
        %p427 = pneg %p46
        %p428 = pneg %p70
        %p429 = pneg %p67
        %p430 = pneg %p91
        %p431 = pneg %p88
        %p432 = pneg %p112
        %p433 = pneg %p109
        %p434 = pneg %p133
        %p435 = pneg %p130
        %p436 = pneg %p154
        %p437 = pneg %p151
        %p438 = pneg %p175
        %p439 = pneg %p172
        %p440 = pneg %p196
        %p441 = pneg %p193
        %p442 = pneg %p217
        %p443 = pneg %p214
        %p444 = pneg %p238
        %p445 = pneg %p235
        %p446 = pneg %p259
        %p447 = pneg %p256
        %p448 = pneg %p280
        %p449 = pneg %p277
        %p450 = pneg %p301
        %p451 = pneg %p298
        %p452 = pneg %p322
        %p453 = pneg %p319
        %p454 = pneg %p348
        %p455 = pneg %p345
        %s456 = sand.u32 %s335, 1
        %s457 = scalar_lea.sflag [#allocation3], %s456
        %s458 = sand.u32 %s335, 1
        %s459 = scalar_lea.vmem [#allocation2], %s458
        %p460 = scmp.lt.s32.totalorder %s28, 1
        %s461 = scalar_select %p460, %s28, 1
        %s462 = smul.addr %s461, 4
        %s463 = smul.addr %s462, 8
        %s464 = scalar_lea.vmem %s0, %s463
        %v465 = vld [vmem:[%s464] sm:$0xff]
        %v466 = vld [vmem:[%s464 + $0x8] sm:$0xff]
        %v467 = vld [vmem:[%s464 + $0x10] sm:$0xff]
        %v468 = vld [vmem:[%s464 + $0x18] sm:$0xf]
        %v469 = vld [vmem:[%s1] sm:$0xff]
        %v470 = vld [vmem:[%s1 + $0x8] sm:$0xff]
        %v471 = vld [vmem:[%s1 + $0x10] sm:$0xff]
        %v472 = vld [vmem:[%s1 + $0x18] sm:$0xff]
        %v473 = vld [vmem:[%s1 + $0x20] sm:$0xff]
        %v474 = vld [vmem:[%s1 + $0x28] sm:$0x3]
        %v475 = vld [vmem:[%s2] sm:$0xff]
        %v476 = vld [vmem:[%s2 + $0x8] sm:$0xff]
        %v477 = vld [vmem:[%s2 + $0x10] sm:$0xff]
        %v478 = vld [vmem:[%s2 + $0x18] sm:$0xff]
        %v479 = vld [vmem:[%s2 + $0x20] sm:$0xff]
        %v480 = vld [vmem:[%s2 + $0x28] sm:$0xff]
        %v481 = vld [vmem:[%s2 + $0x30] sm:$0xff]
        %v482 = vld [vmem:[%s2 + $0x38] sm:$0xff]
        %v483 = vld [vmem:[%s2 + $0x40] sm:$0xff]
        %v484 = vld [vmem:[%s2 + $0x48] sm:$0xff]
        %v485 = vld [vmem:[%s2 + $0x50] sm:$0xf]
        %v486 = vld [vmem:[%s3] sm:$0x1]
        %vm487 = vcmask 228352
        %v489 = vsel %vm487, %v469, 0
        %v492 = vsel %vm487, %v470, 0
        %v495 = vsel %vm487, %v471, 0
        %v498 = vsel %vm487, %v472, 0
        %v501 = vsel %vm487, %v473, 0
        %v504 = vsel %vm487, %v474, 0
        %vm506 = vcmask 1043456
        %v508 = vsel %vm506, %v468, 0
        %510 = vmatprep.subr.mxu0 0.0
        %511 = vmatpush1.msra.mxu0 0.0
        %512 = vmatprep.subr.mxu0 0.0
        %513 = vmatpush1.msra.mxu0 0.0
        %514 = vmatprep.subr.mxu0 0.0
        %515 = vmatpush1.msra.mxu0 0.0
        %516 = vmatprep.subr.mxu0 0.0
        %517 = vmatpush1.msra.mxu0 0.0
        %518 = vmatprep.subr.mxu0 0.0
        %519 = vmatpush1.msra.mxu0 0.0
        %520 = vmatprep.subr.mxu0 0.0
        %521 = vmatpush1.msra.mxu0 0.0
        %522 = vmatprep.subr.mxu0 0.0
        %523 = vmatpush1.msra.mxu0 0.0
        %524 = vmatprep.subr.mxu0 0.0
        %525 = vmatpush1.msra.mxu0 0.0
        %526 = vmatprep.subr.mxu0 0.0
        %527 = vmatpush1.msra.mxu0 0.0
        %528 = vmatprep.subr.mxu0 0.0
        %529 = vmatpush1.msra.mxu0 0.0
        %530 = vmatprep.subr.mxu0 0.0
        %531 = vmatpush1.msra.mxu0 0.0
        %532 = vmatprep.subr.mxu0 0.0
        %533 = vmatpush1.msra.mxu0 0.0
        %534 = vmatprep.subr.mxu0 0.0
        %535 = vmatpush1.msra.mxu0 %v508
        %536 = vmatprep.subr.mxu0 0.0
        %537 = vmatpush1.msra.mxu0 %v467
        %538 = vmatprep.subr.mxu0 0.0
        %539 = vmatpush1.msra.mxu0 %v466
        %540 = vmatprep.subr.mxu0 0.0
        %541 = vmatpush1.msra.mxu0 %v465
        %542 = vmatprep.subr.mxu0 0.0
        %543 = vmatpush2.msra.mxu0 0.0
        %544 = vmatprep.subr.mxu0 0.0
        %545 = vmatpush2.msra.mxu0 0.0
        %546 = vmatprep.subr.mxu0 0.0
        %547 = vmatpush2.msra.mxu0 0.0
        %548 = vmatprep.subr.mxu0 0.0
        %549 = vmatpush2.msra.mxu0 0.0
        %550 = vmatprep.subr.mxu0 0.0
        %551 = vmatpush2.msra.mxu0 0.0
        %552 = vmatprep.subr.mxu0 0.0
        %553 = vmatpush2.msra.mxu0 0.0
        %554 = vmatprep.subr.mxu0 0.0
        %555 = vmatpush2.msra.mxu0 0.0
        %556 = vmatprep.subr.mxu0 0.0
        %557 = vmatpush2.msra.mxu0 0.0
        %558 = vmatprep.subr.mxu0 0.0
        %559 = vmatpush2.msra.mxu0 0.0
        %560 = vmatprep.subr.mxu0 0.0
        %561 = vmatpush2.msra.mxu0 0.0
        %562 = vmatprep.subr.mxu0 0.0
        %563 = vmatpush2.msra.mxu0 0.0
        %564 = vmatprep.subr.mxu0 0.0
        %565 = vmatpush2.msra.mxu0 0.0
        %566 = vmatprep.subr.mxu0 0.0
        %567 = vmatpush2.msra.mxu0 0.0
        %568 = vmatprep.subr.mxu0 0.0
        %569 = vmatpush2.msra.mxu0 0.0
        %570 = vmatprep.subr.mxu0 0.0
        %571 = vmatpush2.msra.mxu0 0.0
        %572 = vmatprep.subr.mxu0 0.0
        %573 = vmatpush2.msra.mxu0 0.0
        %574 = vmatprep.mubr.f32.mxu0 0.0
        %575 = vmatmul.mubr.f32.gmra.mxu0 %v489
        %v576 = vpop.f32.mrf.mxu0
        %v577 = vadd.f32 0.0, %v576
        %v578 = vpop.f32.mrf.mxu0
        %579 = vmatprep.mubr.f32.mxu0 0.0
        %580 = vmatmul.mubr.f32.gmra.mxu0 %v492
        %v581 = vpop.f32.mrf.mxu0
        %v582 = vadd.f32 0.0, %v581
        %v583 = vpop.f32.mrf.mxu0
        %584 = vmatprep.mubr.f32.mxu0 0.0
        %585 = vmatmul.mubr.f32.gmra.mxu0 %v495
        %v586 = vpop.f32.mrf.mxu0
        %v587 = vadd.f32 0.0, %v586
        %v588 = vpop.f32.mrf.mxu0
        %589 = vmatprep.mubr.f32.mxu0 0.0
        %590 = vmatmul.mubr.f32.gmra.mxu0 %v498
        %v591 = vpop.f32.mrf.mxu0
        %v592 = vadd.f32 0.0, %v591
        %v593 = vpop.f32.mrf.mxu0
        %594 = vmatprep.mubr.f32.mxu0 0.0
        %595 = vmatmul.mubr.f32.gmra.mxu0 %v501
        %v596 = vpop.f32.mrf.mxu0
        %v597 = vadd.f32 0.0, %v596
        %v598 = vpop.f32.mrf.mxu0
        %599 = vmatprep.mubr.f32.mxu0 0.0
        %600 = vmatmul.mubr.f32.gmra.mxu0 %v504
        %v601 = vpop.f32.mrf.mxu0
        %v602 = vadd.f32 0.0, %v601
        %v603 = vpop.f32.mrf.mxu0
        %604 = vdwg.mxu0
        %v606 = vsel %vm487, %v577, 0
        %v609 = vsel %vm487, %v582, 0
        %v612 = vsel %vm506, %v478, 0
        %614 = vmatprep.subr.mxu0 0.0
        %615 = vmatpush1.msra.mxu0 0.0
        %616 = vmatprep.subr.mxu0 0.0
        %617 = vmatpush1.msra.mxu0 0.0
        %618 = vmatprep.subr.mxu0 0.0
        %619 = vmatpush1.msra.mxu0 0.0
        %620 = vmatprep.subr.mxu0 0.0
        %621 = vmatpush1.msra.mxu0 0.0
        %622 = vmatprep.subr.mxu0 0.0
        %623 = vmatpush1.msra.mxu0 0.0
        %624 = vmatprep.subr.mxu0 0.0
        %625 = vmatpush1.msra.mxu0 0.0
        %626 = vmatprep.subr.mxu0 0.0
        %627 = vmatpush1.msra.mxu0 0.0
        %628 = vmatprep.subr.mxu0 0.0
        %629 = vmatpush1.msra.mxu0 0.0
        %630 = vmatprep.subr.mxu0 0.0
        %631 = vmatpush1.msra.mxu0 0.0
        %632 = vmatprep.subr.mxu0 0.0
        %633 = vmatpush1.msra.mxu0 0.0
        %634 = vmatprep.subr.mxu0 0.0
        %635 = vmatpush1.msra.mxu0 0.0
        %636 = vmatprep.subr.mxu0 0.0
        %637 = vmatpush1.msra.mxu0 0.0
        %638 = vmatprep.subr.mxu0 0.0
        %639 = vmatpush1.msra.mxu0 %v612
        %640 = vmatprep.subr.mxu0 0.0
        %641 = vmatpush1.msra.mxu0 %v477
        %642 = vmatprep.subr.mxu0 0.0
        %643 = vmatpush1.msra.mxu0 %v476
        %644 = vmatprep.subr.mxu0 0.0
        %645 = vmatpush1.msra.mxu0 %v475
        %646 = vmatprep.subr.mxu0 0.0
        %647 = vmatpush2.msra.mxu0 0.0
        %648 = vmatprep.subr.mxu0 0.0
        %649 = vmatpush2.msra.mxu0 0.0
        %650 = vmatprep.subr.mxu0 0.0
        %651 = vmatpush2.msra.mxu0 0.0
        %652 = vmatprep.subr.mxu0 0.0
        %653 = vmatpush2.msra.mxu0 0.0
        %654 = vmatprep.subr.mxu0 0.0
        %655 = vmatpush2.msra.mxu0 0.0
        %656 = vmatprep.subr.mxu0 0.0
        %657 = vmatpush2.msra.mxu0 0.0
        %658 = vmatprep.subr.mxu0 0.0
        %659 = vmatpush2.msra.mxu0 0.0
        %660 = vmatprep.subr.mxu0 0.0
        %661 = vmatpush2.msra.mxu0 0.0
        %662 = vmatprep.subr.mxu0 0.0
        %663 = vmatpush2.msra.mxu0 0.0
        %664 = vmatprep.subr.mxu0 0.0
        %665 = vmatpush2.msra.mxu0 0.0
        %666 = vmatprep.subr.mxu0 0.0
        %667 = vmatpush2.msra.mxu0 0.0
        %668 = vmatprep.subr.mxu0 0.0
        %669 = vmatpush2.msra.mxu0 0.0
        %670 = vmatprep.subr.mxu0 0.0
        %671 = vmatpush2.msra.mxu0 0.0
        %672 = vmatprep.subr.mxu0 0.0
        %673 = vmatpush2.msra.mxu0 0.0
        %674 = vmatprep.subr.mxu0 0.0
        %675 = vmatpush2.msra.mxu0 0.0
        %676 = vmatprep.subr.mxu0 0.0
        %677 = vmatpush2.msra.mxu0 0.0
        %678 = vmatprep.mubr.f32.mxu0 0.0
        %679 = vmatmul.mubr.f32.gmra.mxu0 %v606
        %v680 = vpop.f32.mrf.mxu0
        %v681 = vadd.f32 0.0, %v680
        %v682 = vpop.f32.mrf.mxu0
        %683 = vmatprep.mubr.f32.mxu0 0.0
        %684 = vmatmul.mubr.f32.gmra.mxu0 %v609
        %v685 = vpop.f32.mrf.mxu0
        %v686 = vadd.f32 0.0, %v685
        %v687 = vpop.f32.mrf.mxu0
        %688 = vdwg.mxu0
        %v690 = vlaneseq
        %v691 = vshrl.u32 %v690, 7
        %v692 = vsub.s32 0, %v691
        %v693 = vrot.slane %v486, %v692
        %v695 = vadd.f32 %v693, %v681
        %v696 = vadd.f32 %v693, %v686
        %vm699 = vcmask 1041408
        %v700 = vrot.slane %v582, 6
        %v701 = vrot.slane %v587, 6
        %v702 = vsel %vm699, %v700, %v701
        %v703 = vrot.slane %v592, 6
        %v704 = vsel %vm699, %v701, %v703
        %v708 = vrot.slane %v478, 4
        %v709 = vrot.slane %v479, 4
        %v710 = vsel %vm506, %v708, %v709
        %v711 = vrot.slane %v480, 4
        %v712 = vsel %vm506, %v709, %v711
        %v713 = vrot.slane %v481, 4
        %v714 = vsel %vm506, %v711, %v713
        %v718 = vsel %vm487, %v702, 0
        %v720 = vsel %vm487, %v704, 0
        %v722 = vsel %vm506, %v713, 0
        %724 = vmatprep.subr.mxu0 0.0
        %725 = vmatpush1.msra.mxu0 0.0
        %726 = vmatprep.subr.mxu0 0.0
        %727 = vmatpush1.msra.mxu0 0.0
        %728 = vmatprep.subr.mxu0 0.0
        %729 = vmatpush1.msra.mxu0 0.0
        %730 = vmatprep.subr.mxu0 0.0
        %731 = vmatpush1.msra.mxu0 0.0
        %732 = vmatprep.subr.mxu0 0.0
        %733 = vmatpush1.msra.mxu0 0.0
        %734 = vmatprep.subr.mxu0 0.0
        %735 = vmatpush1.msra.mxu0 0.0
        %736 = vmatprep.subr.mxu0 0.0
        %737 = vmatpush1.msra.mxu0 0.0
        %738 = vmatprep.subr.mxu0 0.0
        %739 = vmatpush1.msra.mxu0 0.0
        %740 = vmatprep.subr.mxu0 0.0
        %741 = vmatpush1.msra.mxu0 0.0
        %742 = vmatprep.subr.mxu0 0.0
        %743 = vmatpush1.msra.mxu0 0.0
        %744 = vmatprep.subr.mxu0 0.0
        %745 = vmatpush1.msra.mxu0 0.0
        %746 = vmatprep.subr.mxu0 0.0
        %747 = vmatpush1.msra.mxu0 0.0
        %748 = vmatprep.subr.mxu0 0.0
        %749 = vmatpush1.msra.mxu0 %v722
        %750 = vmatprep.subr.mxu0 0.0
        %751 = vmatpush1.msra.mxu0 %v714
        %752 = vmatprep.subr.mxu0 0.0
        %753 = vmatpush1.msra.mxu0 %v712
        %754 = vmatprep.subr.mxu0 0.0
        %755 = vmatpush1.msra.mxu0 %v710
        %756 = vmatprep.subr.mxu0 0.0
        %757 = vmatpush2.msra.mxu0 0.0
        %758 = vmatprep.subr.mxu0 0.0
        %759 = vmatpush2.msra.mxu0 0.0
        %760 = vmatprep.subr.mxu0 0.0
        %761 = vmatpush2.msra.mxu0 0.0
        %762 = vmatprep.subr.mxu0 0.0
        %763 = vmatpush2.msra.mxu0 0.0
        %764 = vmatprep.subr.mxu0 0.0
        %765 = vmatpush2.msra.mxu0 0.0
        %766 = vmatprep.subr.mxu0 0.0
        %767 = vmatpush2.msra.mxu0 0.0
        %768 = vmatprep.subr.mxu0 0.0
        %769 = vmatpush2.msra.mxu0 0.0
        %770 = vmatprep.subr.mxu0 0.0
        %771 = vmatpush2.msra.mxu0 0.0
        %772 = vmatprep.subr.mxu0 0.0
        %773 = vmatpush2.msra.mxu0 0.0
        %774 = vmatprep.subr.mxu0 0.0
        %775 = vmatpush2.msra.mxu0 0.0
        %776 = vmatprep.subr.mxu0 0.0
        %777 = vmatpush2.msra.mxu0 0.0
        %778 = vmatprep.subr.mxu0 0.0
        %779 = vmatpush2.msra.mxu0 0.0
        %780 = vmatprep.subr.mxu0 0.0
        %781 = vmatpush2.msra.mxu0 0.0
        %782 = vmatprep.subr.mxu0 0.0
        %783 = vmatpush2.msra.mxu0 0.0
        %784 = vmatprep.subr.mxu0 0.0
        %785 = vmatpush2.msra.mxu0 0.0
        %786 = vmatprep.subr.mxu0 0.0
        %787 = vmatpush2.msra.mxu0 0.0
        %788 = vmatprep.mubr.f32.mxu0 0.0
        %789 = vmatmul.mubr.f32.gmra.mxu0 %v718
        %v790 = vpop.f32.mrf.mxu0
        %v791 = vadd.f32 0.0, %v790
        %v792 = vpop.f32.mrf.mxu0
        %793 = vmatprep.mubr.f32.mxu0 0.0
        %794 = vmatmul.mubr.f32.gmra.mxu0 %v720
        %v795 = vpop.f32.mrf.mxu0
        %v796 = vadd.f32 0.0, %v795
        %v797 = vpop.f32.mrf.mxu0
        %798 = vdwg.mxu0
        %v799 = vadd.f32 %v695, %v791
        %v800 = vadd.f32 %v696, %v796
        %v803 = vrot.slane %v592, 4
        %v804 = vrot.slane %v597, 4
        %v805 = vsel %vm506, %v803, %v804
        %v806 = vrot.slane %v602, 4
        %v807 = vsel %vm506, %v804, %v806
        %v808 = vsel %vm487, %v805, 0
        %v810 = vsel %vm487, %v807, 0
        %v813 = vsel %vm506, %v485, 0
        %815 = vmatprep.subr.mxu0 0.0
        %816 = vmatpush1.msra.mxu0 0.0
        %817 = vmatprep.subr.mxu0 0.0
        %818 = vmatpush1.msra.mxu0 0.0
        %819 = vmatprep.subr.mxu0 0.0
        %820 = vmatpush1.msra.mxu0 0.0
        %821 = vmatprep.subr.mxu0 0.0
        %822 = vmatpush1.msra.mxu0 0.0
        %823 = vmatprep.subr.mxu0 0.0
        %824 = vmatpush1.msra.mxu0 0.0
        %825 = vmatprep.subr.mxu0 0.0
        %826 = vmatpush1.msra.mxu0 0.0
        %827 = vmatprep.subr.mxu0 0.0
        %828 = vmatpush1.msra.mxu0 0.0
        %829 = vmatprep.subr.mxu0 0.0
        %830 = vmatpush1.msra.mxu0 0.0
        %831 = vmatprep.subr.mxu0 0.0
        %832 = vmatpush1.msra.mxu0 0.0
        %833 = vmatprep.subr.mxu0 0.0
        %834 = vmatpush1.msra.mxu0 0.0
        %835 = vmatprep.subr.mxu0 0.0
        %836 = vmatpush1.msra.mxu0 0.0
        %837 = vmatprep.subr.mxu0 0.0
        %838 = vmatpush1.msra.mxu0 0.0
        %839 = vmatprep.subr.mxu0 0.0
        %840 = vmatpush1.msra.mxu0 %v813
        %841 = vmatprep.subr.mxu0 0.0
        %842 = vmatpush1.msra.mxu0 %v484
        %843 = vmatprep.subr.mxu0 0.0
        %844 = vmatpush1.msra.mxu0 %v483
        %845 = vmatprep.subr.mxu0 0.0
        %846 = vmatpush1.msra.mxu0 %v482
        %847 = vmatprep.subr.mxu0 0.0
        %848 = vmatpush2.msra.mxu0 0.0
        %849 = vmatprep.subr.mxu0 0.0
        %850 = vmatpush2.msra.mxu0 0.0
        %851 = vmatprep.subr.mxu0 0.0
        %852 = vmatpush2.msra.mxu0 0.0
        %853 = vmatprep.subr.mxu0 0.0
        %854 = vmatpush2.msra.mxu0 0.0
        %855 = vmatprep.subr.mxu0 0.0
        %856 = vmatpush2.msra.mxu0 0.0
        %857 = vmatprep.subr.mxu0 0.0
        %858 = vmatpush2.msra.mxu0 0.0
        %859 = vmatprep.subr.mxu0 0.0
        %860 = vmatpush2.msra.mxu0 0.0
        %861 = vmatprep.subr.mxu0 0.0
        %862 = vmatpush2.msra.mxu0 0.0
        %863 = vmatprep.subr.mxu0 0.0
        %864 = vmatpush2.msra.mxu0 0.0
        %865 = vmatprep.subr.mxu0 0.0
        %866 = vmatpush2.msra.mxu0 0.0
        %867 = vmatprep.subr.mxu0 0.0
        %868 = vmatpush2.msra.mxu0 0.0
        %869 = vmatprep.subr.mxu0 0.0
        %870 = vmatpush2.msra.mxu0 0.0
        %871 = vmatprep.subr.mxu0 0.0
        %872 = vmatpush2.msra.mxu0 0.0
        %873 = vmatprep.subr.mxu0 0.0
        %874 = vmatpush2.msra.mxu0 0.0
        %875 = vmatprep.subr.mxu0 0.0
        %876 = vmatpush2.msra.mxu0 0.0
        %877 = vmatprep.subr.mxu0 0.0
        %878 = vmatpush2.msra.mxu0 0.0
        %879 = vmatprep.mubr.f32.mxu0 0.0
        %880 = vmatmul.mubr.f32.gmra.mxu0 %v808
        %v881 = vpop.f32.mrf.mxu0
        %v882 = vadd.f32 0.0, %v881
        %v883 = vpop.f32.mrf.mxu0
        %884 = vmatprep.mubr.f32.mxu0 0.0
        %885 = vmatmul.mubr.f32.gmra.mxu0 %v810
        %v886 = vpop.f32.mrf.mxu0
        %v887 = vadd.f32 0.0, %v886
        %v888 = vpop.f32.mrf.mxu0
        %889 = vdwg.mxu0
        %v890 = vadd.f32 %v799, %v882
        %v891 = vadd.f32 %v800, %v887
        %v892 = vmax.f32 %v890, 0.0
        %v893 = vmax.f32 %v891, 0.0
        %v894 = vld [vmem:[%s4] sm:$0xff]
        %v895 = vld [vmem:[%s4 + $0x8] sm:$0xff]
        %v896 = vld [vmem:[%s4 + $0x10] sm:$0x1f]
        %v897 = vld [vmem:[%s5] sm:$0xff]
        %v898 = vld [vmem:[%s5 + $0x8] sm:$0xff]
        %v899 = vld [vmem:[%s5 + $0x10] sm:$0xff]
        %v900 = vld [vmem:[%s5 + $0x18] sm:$0xff]
        %v901 = vld [vmem:[%s5 + $0x20] sm:$0xff]
        %v902 = vld [vmem:[%s5 + $0x28] sm:$0xff]
        %v903 = vld [vmem:[%s5 + $0x30] sm:$0xff]
        %v904 = vld [vmem:[%s5 + $0x38] sm:$0xff]
        %v905 = vld [vmem:[%s5 + $0x40] sm:$0xff]
        %v906 = vld [vmem:[%s5 + $0x48] sm:$0xff]
        %v907 = vld [vmem:[%s5 + $0x50] sm:$0xff]
        %v908 = vld [vmem:[%s5 + $0x58] sm:$0xff]
        %v909 = vld [vmem:[%s5 + $0x60] sm:$0xff]
        %v910 = vld [vmem:[%s5 + $0x68] sm:$0xff]
        %v911 = vld [vmem:[%s5 + $0x70] sm:$0xff]
        %v912 = vld [vmem:[%s5 + $0x78] sm:$0xff]
        %v913 = vld [vmem:[%s5 + $0x80] sm:$0xff]
        %v914 = vld [vmem:[%s5 + $0x88] sm:$0xff]
        %v915 = vld [vmem:[%s5 + $0x90] sm:$0xff]
        %v916 = vld [vmem:[%s5 + $0x98] sm:$0xff]
        %v917 = vld [vmem:[%s5 + $0xa0] sm:$0xff]
        %v918 = vld [vmem:[%s5 + $0xa8] sm:$0xff]
        %v919 = vld [vmem:[%s5 + $0xb0] sm:$0xff]
        %v920 = vld [vmem:[%s5 + $0xb8] sm:$0xff]
        %v921 = vld [vmem:[%s5 + $0xc0] sm:$0xff]
        %v922 = vld [vmem:[%s5 + $0xc8] sm:$0xff]
        %v923 = vld [vmem:[%s5 + $0xd0] sm:$0xff]
        %v924 = vld [vmem:[%s5 + $0xd8] sm:$0xff]
        %v925 = vld [vmem:[%s5 + $0xe0] sm:$0xff]
        %v926 = vld [vmem:[%s5 + $0xe8] sm:$0xff]
        %v927 = vld [vmem:[%s5 + $0xf0] sm:$0xff]
        %v928 = vld [vmem:[%s5 + $0xf8] sm:$0xff]
        %v929 = vld [vmem:[%s5 + $0x100] sm:$0xff]
        %v930 = vld [vmem:[%s5 + $0x108] sm:$0xff]
        %v931 = vld [vmem:[%s5 + $0x110] sm:$0xff]
        %v932 = vld [vmem:[%s5 + $0x118] sm:$0xff]
        %v933 = vld [vmem:[%s5 + $0x120] sm:$0xff]
        %v934 = vld [vmem:[%s5 + $0x128] sm:$0xff]
        %v935 = vld [vmem:[%s5 + $0x130] sm:$0xff]
        %v936 = vld [vmem:[%s5 + $0x138] sm:$0xff]
        %v937 = vld [vmem:[%s5 + $0x140] sm:$0xff]
        %v938 = vld [vmem:[%s5 + $0x148] sm:$0xff]
        %v939 = vld [vmem:[%s6] sm:$0x1]
        %vm940 = vcmask 113664
        %v942 = vsel %vm940, %v894, 0
        %v945 = vsel %vm940, %v895, 0
        %v948 = vsel %vm940, %v896, 0
        %vm950 = vcmask 1045504
        %v952 = vsel %vm950, %v893, 0
        %954 = vmatprep.subr.mxu0 0.0
        %955 = vmatpush1.msra.mxu0 0.0
        %956 = vmatprep.subr.mxu0 0.0
        %957 = vmatpush1.msra.mxu0 0.0
        %958 = vmatprep.subr.mxu0 0.0
        %959 = vmatpush1.msra.mxu0 0.0
        %960 = vmatprep.subr.mxu0 0.0
        %961 = vmatpush1.msra.mxu0 0.0
        %962 = vmatprep.subr.mxu0 0.0
        %963 = vmatpush1.msra.mxu0 0.0
        %964 = vmatprep.subr.mxu0 0.0
        %965 = vmatpush1.msra.mxu0 0.0
        %966 = vmatprep.subr.mxu0 0.0
        %967 = vmatpush1.msra.mxu0 0.0
        %968 = vmatprep.subr.mxu0 0.0
        %969 = vmatpush1.msra.mxu0 0.0
        %970 = vmatprep.subr.mxu0 0.0
        %971 = vmatpush1.msra.mxu0 0.0
        %972 = vmatprep.subr.mxu0 0.0
        %973 = vmatpush1.msra.mxu0 0.0
        %974 = vmatprep.subr.mxu0 0.0
        %975 = vmatpush1.msra.mxu0 0.0
        %976 = vmatprep.subr.mxu0 0.0
        %977 = vmatpush1.msra.mxu0 0.0
        %978 = vmatprep.subr.mxu0 0.0
        %979 = vmatpush1.msra.mxu0 0.0
        %980 = vmatprep.subr.mxu0 0.0
        %981 = vmatpush1.msra.mxu0 0.0
        %982 = vmatprep.subr.mxu0 0.0
        %983 = vmatpush1.msra.mxu0 %v952
        %984 = vmatprep.subr.mxu0 0.0
        %985 = vmatpush1.msra.mxu0 %v892
        %986 = vmatprep.subr.mxu0 0.0
        %987 = vmatpush2.msra.mxu0 0.0
        %988 = vmatprep.subr.mxu0 0.0
        %989 = vmatpush2.msra.mxu0 0.0
        %990 = vmatprep.subr.mxu0 0.0
        %991 = vmatpush2.msra.mxu0 0.0
        %992 = vmatprep.subr.mxu0 0.0
        %993 = vmatpush2.msra.mxu0 0.0
        %994 = vmatprep.subr.mxu0 0.0
        %995 = vmatpush2.msra.mxu0 0.0
        %996 = vmatprep.subr.mxu0 0.0
        %997 = vmatpush2.msra.mxu0 0.0
        %998 = vmatprep.subr.mxu0 0.0
        %999 = vmatpush2.msra.mxu0 0.0
        %1000 = vmatprep.subr.mxu0 0.0
        %1001 = vmatpush2.msra.mxu0 0.0
        %1002 = vmatprep.subr.mxu0 0.0
        %1003 = vmatpush2.msra.mxu0 0.0
        %1004 = vmatprep.subr.mxu0 0.0
        %1005 = vmatpush2.msra.mxu0 0.0
        %1006 = vmatprep.subr.mxu0 0.0
        %1007 = vmatpush2.msra.mxu0 0.0
        %1008 = vmatprep.subr.mxu0 0.0
        %1009 = vmatpush2.msra.mxu0 0.0
        %1010 = vmatprep.subr.mxu0 0.0
        %1011 = vmatpush2.msra.mxu0 0.0
        %1012 = vmatprep.subr.mxu0 0.0
        %1013 = vmatpush2.msra.mxu0 0.0
        %1014 = vmatprep.subr.mxu0 0.0
        %1015 = vmatpush2.msra.mxu0 0.0
        %1016 = vmatprep.subr.mxu0 0.0
        %1017 = vmatpush2.msra.mxu0 0.0
        %1018 = vmatprep.mubr.f32.mxu0 0.0
        %1019 = vmatmul.mubr.f32.gmra.mxu0 %v942
        %v1020 = vpop.f32.mrf.mxu0
        %v1021 = vadd.f32 0.0, %v1020
        %v1022 = vpop.f32.mrf.mxu0
        %1023 = vmatprep.mubr.f32.mxu0 0.0
        %1024 = vmatmul.mubr.f32.gmra.mxu0 %v945
        %v1025 = vpop.f32.mrf.mxu0
        %v1026 = vadd.f32 0.0, %v1025
        %v1027 = vpop.f32.mrf.mxu0
        %1028 = vmatprep.mubr.f32.mxu0 0.0
        %1029 = vmatmul.mubr.f32.gmra.mxu0 %v948
        %v1030 = vpop.f32.mrf.mxu0
        %v1031 = vadd.f32 0.0, %v1030
        %v1032 = vpop.f32.mrf.mxu0
        %1033 = vdwg.mxu0
        %vm1034 = vcmask 916480
        %v1036 = vsel %vm1034, %v1021, 0
        %1038 = vmatprep.subr.mxu0 0.0
        %1039 = vmatpush1.msra.mxu0 0.0
        %1040 = vmatprep.subr.mxu0 0.0
        %1041 = vmatpush1.msra.mxu0 0.0
        %1042 = vmatprep.subr.mxu0 0.0
        %1043 = vmatpush1.msra.mxu0 %v910
        %1044 = vmatprep.subr.mxu0 0.0
        %1045 = vmatpush1.msra.mxu0 %v909
        %1046 = vmatprep.subr.mxu0 0.0
        %1047 = vmatpush1.msra.mxu0 %v908
        %1048 = vmatprep.subr.mxu0 0.0
        %1049 = vmatpush1.msra.mxu0 %v907
        %1050 = vmatprep.subr.mxu0 0.0
        %1051 = vmatpush1.msra.mxu0 %v906
        %1052 = vmatprep.subr.mxu0 0.0
        %1053 = vmatpush1.msra.mxu0 %v905
        %1054 = vmatprep.subr.mxu0 0.0
        %1055 = vmatpush1.msra.mxu0 %v904
        %1056 = vmatprep.subr.mxu0 0.0
        %1057 = vmatpush1.msra.mxu0 %v903
        %1058 = vmatprep.subr.mxu0 0.0
        %1059 = vmatpush1.msra.mxu0 %v902
        %1060 = vmatprep.subr.mxu0 0.0
        %1061 = vmatpush1.msra.mxu0 %v901
        %1062 = vmatprep.subr.mxu0 0.0
        %1063 = vmatpush1.msra.mxu0 %v900
        %1064 = vmatprep.subr.mxu0 0.0
        %1065 = vmatpush1.msra.mxu0 %v899
        %1066 = vmatprep.subr.mxu0 0.0
        %1067 = vmatpush1.msra.mxu0 %v898
        %1068 = vmatprep.subr.mxu0 0.0
        %1069 = vmatpush1.msra.mxu0 %v897
        %1070 = vmatprep.subr.mxu0 0.0
        %1071 = vmatpush2.msra.mxu0 0.0
        %1072 = vmatprep.subr.mxu0 0.0
        %1073 = vmatpush2.msra.mxu0 0.0
        %1074 = vmatprep.subr.mxu0 0.0
        %1075 = vmatpush2.msra.mxu0 0.0
        %1076 = vmatprep.subr.mxu0 0.0
        %1077 = vmatpush2.msra.mxu0 0.0
        %1078 = vmatprep.subr.mxu0 0.0
        %1079 = vmatpush2.msra.mxu0 0.0
        %1080 = vmatprep.subr.mxu0 0.0
        %1081 = vmatpush2.msra.mxu0 0.0
        %1082 = vmatprep.subr.mxu0 0.0
        %1083 = vmatpush2.msra.mxu0 0.0
        %1084 = vmatprep.subr.mxu0 0.0
        %1085 = vmatpush2.msra.mxu0 0.0
        %1086 = vmatprep.subr.mxu0 0.0
        %1087 = vmatpush2.msra.mxu0 0.0
        %1088 = vmatprep.subr.mxu0 0.0
        %1089 = vmatpush2.msra.mxu0 0.0
        %1090 = vmatprep.subr.mxu0 0.0
        %1091 = vmatpush2.msra.mxu0 0.0
        %1092 = vmatprep.subr.mxu0 0.0
        %1093 = vmatpush2.msra.mxu0 0.0
        %1094 = vmatprep.subr.mxu0 0.0
        %1095 = vmatpush2.msra.mxu0 0.0
        %1096 = vmatprep.subr.mxu0 0.0
        %1097 = vmatpush2.msra.mxu0 0.0
        %1098 = vmatprep.subr.mxu0 0.0
        %1099 = vmatpush2.msra.mxu0 0.0
        %1100 = vmatprep.subr.mxu0 0.0
        %1101 = vmatpush2.msra.mxu0 0.0
        %1102 = vmatprep.mubr.f32.mxu0 0.0
        %1103 = vmatmul.mubr.f32.gmra.mxu0 %v1036
        %v1104 = vpop.f32.mrf.mxu0
        %v1105 = vadd.f32 0.0, %v1104
        %v1106 = vpop.f32.mrf.mxu0
        %1107 = vdwg.mxu0
        %v1109 = vlaneseq
        %v1110 = vshrl.u32 %v1109, 7
        %v1111 = vsub.s32 0, %v1110
        %v1112 = vrot.slane %v939, %v1111
        %v1114 = vadd.f32 %v1112, %v1105
        %vm1116 = vcmask 1040384
        %v1117 = vrot.slane %v1021, 7
        %v1118 = vrot.slane %v1026, 7
        %v1119 = vsel %vm1116, %v1117, %v1118
        %v1120 = vsel %vm1034, %v1119, 0
        %1122 = vmatprep.subr.mxu0 0.0
        %1123 = vmatpush1.msra.mxu0 0.0
        %1124 = vmatprep.subr.mxu0 0.0
        %1125 = vmatpush1.msra.mxu0 0.0
        %1126 = vmatprep.subr.mxu0 0.0
        %1127 = vmatpush1.msra.mxu0 %v924
        %1128 = vmatprep.subr.mxu0 0.0
        %1129 = vmatpush1.msra.mxu0 %v923
        %1130 = vmatprep.subr.mxu0 0.0
        %1131 = vmatpush1.msra.mxu0 %v922
        %1132 = vmatprep.subr.mxu0 0.0
        %1133 = vmatpush1.msra.mxu0 %v921
        %1134 = vmatprep.subr.mxu0 0.0
        %1135 = vmatpush1.msra.mxu0 %v920
        %1136 = vmatprep.subr.mxu0 0.0
        %1137 = vmatpush1.msra.mxu0 %v919
        %1138 = vmatprep.subr.mxu0 0.0
        %1139 = vmatpush1.msra.mxu0 %v918
        %1140 = vmatprep.subr.mxu0 0.0
        %1141 = vmatpush1.msra.mxu0 %v917
        %1142 = vmatprep.subr.mxu0 0.0
        %1143 = vmatpush1.msra.mxu0 %v916
        %1144 = vmatprep.subr.mxu0 0.0
        %1145 = vmatpush1.msra.mxu0 %v915
        %1146 = vmatprep.subr.mxu0 0.0
        %1147 = vmatpush1.msra.mxu0 %v914
        %1148 = vmatprep.subr.mxu0 0.0
        %1149 = vmatpush1.msra.mxu0 %v913
        %1150 = vmatprep.subr.mxu0 0.0
        %1151 = vmatpush1.msra.mxu0 %v912
        %1152 = vmatprep.subr.mxu0 0.0
        %1153 = vmatpush1.msra.mxu0 %v911
        %1154 = vmatprep.subr.mxu0 0.0
        %1155 = vmatpush2.msra.mxu0 0.0
        %1156 = vmatprep.subr.mxu0 0.0
        %1157 = vmatpush2.msra.mxu0 0.0
        %1158 = vmatprep.subr.mxu0 0.0
        %1159 = vmatpush2.msra.mxu0 0.0
        %1160 = vmatprep.subr.mxu0 0.0
        %1161 = vmatpush2.msra.mxu0 0.0
        %1162 = vmatprep.subr.mxu0 0.0
        %1163 = vmatpush2.msra.mxu0 0.0
        %1164 = vmatprep.subr.mxu0 0.0
        %1165 = vmatpush2.msra.mxu0 0.0
        %1166 = vmatprep.subr.mxu0 0.0
        %1167 = vmatpush2.msra.mxu0 0.0
        %1168 = vmatprep.subr.mxu0 0.0
        %1169 = vmatpush2.msra.mxu0 0.0
        %1170 = vmatprep.subr.mxu0 0.0
        %1171 = vmatpush2.msra.mxu0 0.0
        %1172 = vmatprep.subr.mxu0 0.0
        %1173 = vmatpush2.msra.mxu0 0.0
        %1174 = vmatprep.subr.mxu0 0.0
        %1175 = vmatpush2.msra.mxu0 0.0
        %1176 = vmatprep.subr.mxu0 0.0
        %1177 = vmatpush2.msra.mxu0 0.0
        %1178 = vmatprep.subr.mxu0 0.0
        %1179 = vmatpush2.msra.mxu0 0.0
        %1180 = vmatprep.subr.mxu0 0.0
        %1181 = vmatpush2.msra.mxu0 0.0
        %1182 = vmatprep.subr.mxu0 0.0
        %1183 = vmatpush2.msra.mxu0 0.0
        %1184 = vmatprep.subr.mxu0 0.0
        %1185 = vmatpush2.msra.mxu0 0.0
        %1186 = vmatprep.mubr.f32.mxu0 0.0
        %1187 = vmatmul.mubr.f32.gmra.mxu0 %v1120
        %v1188 = vpop.f32.mrf.mxu0
        %v1189 = vadd.f32 0.0, %v1188
        %v1190 = vpop.f32.mrf.mxu0
        %1191 = vdwg.mxu0
        %v1192 = vadd.f32 %v1114, %v1189
        %v1194 = vrot.slane %v1026, 6
        %v1195 = vrot.slane %v1031, 6
        %v1196 = vsel %vm699, %v1194, %v1195
        %v1197 = vsel %vm1034, %v1196, 0
        %1199 = vmatprep.subr.mxu0 0.0
        %1200 = vmatpush1.msra.mxu0 0.0
        %1201 = vmatprep.subr.mxu0 0.0
        %1202 = vmatpush1.msra.mxu0 0.0
        %1203 = vmatprep.subr.mxu0 0.0
        %1204 = vmatpush1.msra.mxu0 %v938
        %1205 = vmatprep.subr.mxu0 0.0
        %1206 = vmatpush1.msra.mxu0 %v937
        %1207 = vmatprep.subr.mxu0 0.0
        %1208 = vmatpush1.msra.mxu0 %v936
        %1209 = vmatprep.subr.mxu0 0.0
        %1210 = vmatpush1.msra.mxu0 %v935
        %1211 = vmatprep.subr.mxu0 0.0
        %1212 = vmatpush1.msra.mxu0 %v934
        %1213 = vmatprep.subr.mxu0 0.0
        %1214 = vmatpush1.msra.mxu0 %v933
        %1215 = vmatprep.subr.mxu0 0.0
        %1216 = vmatpush1.msra.mxu0 %v932
        %1217 = vmatprep.subr.mxu0 0.0
        %1218 = vmatpush1.msra.mxu0 %v931
        %1219 = vmatprep.subr.mxu0 0.0
        %1220 = vmatpush1.msra.mxu0 %v930
        %1221 = vmatprep.subr.mxu0 0.0
        %1222 = vmatpush1.msra.mxu0 %v929
        %1223 = vmatprep.subr.mxu0 0.0
        %1224 = vmatpush1.msra.mxu0 %v928
        %1225 = vmatprep.subr.mxu0 0.0
        %1226 = vmatpush1.msra.mxu0 %v927
        %1227 = vmatprep.subr.mxu0 0.0
        %1228 = vmatpush1.msra.mxu0 %v926
        %1229 = vmatprep.subr.mxu0 0.0
        %1230 = vmatpush1.msra.mxu0 %v925
        %1231 = vmatprep.subr.mxu0 0.0
        %1232 = vmatpush2.msra.mxu0 0.0
        %1233 = vmatprep.subr.mxu0 0.0
        %1234 = vmatpush2.msra.mxu0 0.0
        %1235 = vmatprep.subr.mxu0 0.0
        %1236 = vmatpush2.msra.mxu0 0.0
        %1237 = vmatprep.subr.mxu0 0.0
        %1238 = vmatpush2.msra.mxu0 0.0
        %1239 = vmatprep.subr.mxu0 0.0
        %1240 = vmatpush2.msra.mxu0 0.0
        %1241 = vmatprep.subr.mxu0 0.0
        %1242 = vmatpush2.msra.mxu0 0.0
        %1243 = vmatprep.subr.mxu0 0.0
        %1244 = vmatpush2.msra.mxu0 0.0
        %1245 = vmatprep.subr.mxu0 0.0
        %1246 = vmatpush2.msra.mxu0 0.0
        %1247 = vmatprep.subr.mxu0 0.0
        %1248 = vmatpush2.msra.mxu0 0.0
        %1249 = vmatprep.subr.mxu0 0.0
        %1250 = vmatpush2.msra.mxu0 0.0
        %1251 = vmatprep.subr.mxu0 0.0
        %1252 = vmatpush2.msra.mxu0 0.0
        %1253 = vmatprep.subr.mxu0 0.0
        %1254 = vmatpush2.msra.mxu0 0.0
        %1255 = vmatprep.subr.mxu0 0.0
        %1256 = vmatpush2.msra.mxu0 0.0
        %1257 = vmatprep.subr.mxu0 0.0
        %1258 = vmatpush2.msra.mxu0 0.0
        %1259 = vmatprep.subr.mxu0 0.0
        %1260 = vmatpush2.msra.mxu0 0.0
        %1261 = vmatprep.subr.mxu0 0.0
        %1262 = vmatpush2.msra.mxu0 0.0
        %1263 = vmatprep.mubr.f32.mxu0 0.0
        %1264 = vmatmul.mubr.f32.gmra.mxu0 %v1197
        %v1265 = vpop.f32.mrf.mxu0
        %v1266 = vadd.f32 0.0, %v1265
        %v1267 = vpop.f32.mrf.mxu0
        %1268 = vdwg.mxu0
        %v1269 = vadd.f32 %v1192, %v1266
        %v1270 = vmax.f32 %v1269, 0.0
        %v1271 = vld [vmem:[%s7] sm:$0xff]
        %v1272 = vld [vmem:[%s7 + $0x8] sm:$0x1]
        %v1273 = vld [vmem:[%s8] sm:$0xff]
        %v1274 = vld [vmem:[%s8 + $0x8] sm:$0xff]
        %v1275 = vld [vmem:[%s8 + $0x10] sm:$0xff]
        %v1276 = vld [vmem:[%s8 + $0x18] sm:$0xff]
        %v1277 = vld [vmem:[%s8 + $0x20] sm:$0xff]
        %v1278 = vld [vmem:[%s8 + $0x28] sm:$0xff]
        %v1279 = vld [vmem:[%s8 + $0x30] sm:$0xff]
        %v1280 = vld [vmem:[%s8 + $0x38] sm:$0xff]
        %v1281 = vld [vmem:[%s8 + $0x40] sm:$0xff]
        %v1282 = vld [vmem:[%s8 + $0x48] sm:$0xff]
        %v1283 = vld [vmem:[%s8 + $0x50] sm:$0xff]
        %v1284 = vld [vmem:[%s8 + $0x58] sm:$0xff]
        %v1285 = vld [vmem:[%s8 + $0x60] sm:$0xff]
        %v1286 = vld [vmem:[%s8 + $0x68] sm:$0xff]
        %v1287 = vld [vmem:[%s8 + $0x70] sm:$0xff]
        %v1288 = vld [vmem:[%s8 + $0x78] sm:$0xff]
        %v1289 = vld [vmem:[%s8 + $0x80] sm:$0xff]
        %v1290 = vld [vmem:[%s8 + $0x88] sm:$0xff]
        %v1291 = vld [vmem:[%s8 + $0x90] sm:$0xff]
        %v1292 = vld [vmem:[%s8 + $0x98] sm:$0xff]
        %v1293 = vld [vmem:[%s8 + $0xa0] sm:$0xff]
        %v1294 = vld [vmem:[%s8 + $0xa8] sm:$0xff]
        %v1295 = vld [vmem:[%s8 + $0xb0] sm:$0xff]
        %v1296 = vld [vmem:[%s8 + $0xb8] sm:$0xff]
        %v1297 = vld [vmem:[%s8 + $0xc0] sm:$0xff]
        %v1298 = vld [vmem:[%s8 + $0xc8] sm:$0xff]
        %v1299 = vld [vmem:[%s8 + $0xd0] sm:$0xff]
        %v1300 = vld [vmem:[%s8 + $0xd8] sm:$0xff]
        %v1301 = vld [vmem:[%s8 + $0xe0] sm:$0xff]
        %v1302 = vld [vmem:[%s8 + $0xe8] sm:$0xff]
        %v1303 = vld [vmem:[%s8 + $0xf0] sm:$0xff]
        %v1304 = vld [vmem:[%s8 + $0xf8] sm:$0xff]
        %v1305 = vld [vmem:[%s8 + $0x100] sm:$0xff]
        %v1306 = vld [vmem:[%s8 + $0x108] sm:$0xff]
        %v1307 = vld [vmem:[%s8 + $0x110] sm:$0xff]
        %v1308 = vld [vmem:[%s8 + $0x118] sm:$0xff]
        %v1309 = vld [vmem:[%s8 + $0x120] sm:$0xff]
        %v1310 = vld [vmem:[%s8 + $0x128] sm:$0xff]
        %v1311 = vld [vmem:[%s8 + $0x130] sm:$0xff]
        %v1312 = vld [vmem:[%s8 + $0x138] sm:$0xff]
        %v1313 = vld [vmem:[%s8 + $0x140] sm:$0xff]
        %v1314 = vld [vmem:[%s8 + $0x148] sm:$0xff]
        %v1315 = vld [vmem:[%s9] sm:$0x1]
        %vm1316 = vcmask 56320
        %v1318 = vsel %vm1316, %v1271, 0
        %v1321 = vsel %vm1316, %v1272, 0
        %vm1323 = vcmask 1046528
        %v1325 = vsel %vm1323, %v1270, 0
        %1327 = vmatprep.subr.mxu0 0.0
        %1328 = vmatpush1.msra.mxu0 0.0
        %1329 = vmatprep.subr.mxu0 0.0
        %1330 = vmatpush1.msra.mxu0 0.0
        %1331 = vmatprep.subr.mxu0 0.0
        %1332 = vmatpush1.msra.mxu0 0.0
        %1333 = vmatprep.subr.mxu0 0.0
        %1334 = vmatpush1.msra.mxu0 0.0
        %1335 = vmatprep.subr.mxu0 0.0
        %1336 = vmatpush1.msra.mxu0 0.0
        %1337 = vmatprep.subr.mxu0 0.0
        %1338 = vmatpush1.msra.mxu0 0.0
        %1339 = vmatprep.subr.mxu0 0.0
        %1340 = vmatpush1.msra.mxu0 0.0
        %1341 = vmatprep.subr.mxu0 0.0
        %1342 = vmatpush1.msra.mxu0 0.0
        %1343 = vmatprep.subr.mxu0 0.0
        %1344 = vmatpush1.msra.mxu0 0.0
        %1345 = vmatprep.subr.mxu0 0.0
        %1346 = vmatpush1.msra.mxu0 0.0
        %1347 = vmatprep.subr.mxu0 0.0
        %1348 = vmatpush1.msra.mxu0 0.0
        %1349 = vmatprep.subr.mxu0 0.0
        %1350 = vmatpush1.msra.mxu0 0.0
        %1351 = vmatprep.subr.mxu0 0.0
        %1352 = vmatpush1.msra.mxu0 0.0
        %1353 = vmatprep.subr.mxu0 0.0
        %1354 = vmatpush1.msra.mxu0 0.0
        %1355 = vmatprep.subr.mxu0 0.0
        %1356 = vmatpush1.msra.mxu0 0.0
        %1357 = vmatprep.subr.mxu0 0.0
        %1358 = vmatpush1.msra.mxu0 %v1325
        %1359 = vmatprep.subr.mxu0 0.0
        %1360 = vmatpush2.msra.mxu0 0.0
        %1361 = vmatprep.subr.mxu0 0.0
        %1362 = vmatpush2.msra.mxu0 0.0
        %1363 = vmatprep.subr.mxu0 0.0
        %1364 = vmatpush2.msra.mxu0 0.0
        %1365 = vmatprep.subr.mxu0 0.0
        %1366 = vmatpush2.msra.mxu0 0.0
        %1367 = vmatprep.subr.mxu0 0.0
        %1368 = vmatpush2.msra.mxu0 0.0
        %1369 = vmatprep.subr.mxu0 0.0
        %1370 = vmatpush2.msra.mxu0 0.0
        %1371 = vmatprep.subr.mxu0 0.0
        %1372 = vmatpush2.msra.mxu0 0.0
        %1373 = vmatprep.subr.mxu0 0.0
        %1374 = vmatpush2.msra.mxu0 0.0
        %1375 = vmatprep.subr.mxu0 0.0
        %1376 = vmatpush2.msra.mxu0 0.0
        %1377 = vmatprep.subr.mxu0 0.0
        %1378 = vmatpush2.msra.mxu0 0.0
        %1379 = vmatprep.subr.mxu0 0.0
        %1380 = vmatpush2.msra.mxu0 0.0
        %1381 = vmatprep.subr.mxu0 0.0
        %1382 = vmatpush2.msra.mxu0 0.0
        %1383 = vmatprep.subr.mxu0 0.0
        %1384 = vmatpush2.msra.mxu0 0.0
        %1385 = vmatprep.subr.mxu0 0.0
        %1386 = vmatpush2.msra.mxu0 0.0
        %1387 = vmatprep.subr.mxu0 0.0
        %1388 = vmatpush2.msra.mxu0 0.0
        %1389 = vmatprep.subr.mxu0 0.0
        %1390 = vmatpush2.msra.mxu0 0.0
        %1391 = vmatprep.mubr.f32.mxu0 0.0
        %1392 = vmatmul.mubr.f32.gmra.mxu0 %v1318
        %v1393 = vpop.f32.mrf.mxu0
        %v1394 = vadd.f32 0.0, %v1393
        %v1395 = vpop.f32.mrf.mxu0
        %1396 = vmatprep.mubr.f32.mxu0 0.0
        %1397 = vmatmul.mubr.f32.gmra.mxu0 %v1321
        %v1398 = vpop.f32.mrf.mxu0
        %v1399 = vadd.f32 0.0, %v1398
        %v1400 = vpop.f32.mrf.mxu0
        %1401 = vdwg.mxu0
        %v1403 = vsel %vm1034, %v1394, 0
        %1405 = vmatprep.subr.mxu0 0.0
        %1406 = vmatpush1.msra.mxu0 0.0
        %1407 = vmatprep.subr.mxu0 0.0
        %1408 = vmatpush1.msra.mxu0 0.0
        %1409 = vmatprep.subr.mxu0 0.0
        %1410 = vmatpush1.msra.mxu0 %v1286
        %1411 = vmatprep.subr.mxu0 0.0
        %1412 = vmatpush1.msra.mxu0 %v1285
        %1413 = vmatprep.subr.mxu0 0.0
        %1414 = vmatpush1.msra.mxu0 %v1284
        %1415 = vmatprep.subr.mxu0 0.0
        %1416 = vmatpush1.msra.mxu0 %v1283
        %1417 = vmatprep.subr.mxu0 0.0
        %1418 = vmatpush1.msra.mxu0 %v1282
        %1419 = vmatprep.subr.mxu0 0.0
        %1420 = vmatpush1.msra.mxu0 %v1281
        %1421 = vmatprep.subr.mxu0 0.0
        %1422 = vmatpush1.msra.mxu0 %v1280
        %1423 = vmatprep.subr.mxu0 0.0
        %1424 = vmatpush1.msra.mxu0 %v1279
        %1425 = vmatprep.subr.mxu0 0.0
        %1426 = vmatpush1.msra.mxu0 %v1278
        %1427 = vmatprep.subr.mxu0 0.0
        %1428 = vmatpush1.msra.mxu0 %v1277
        %1429 = vmatprep.subr.mxu0 0.0
        %1430 = vmatpush1.msra.mxu0 %v1276
        %1431 = vmatprep.subr.mxu0 0.0
        %1432 = vmatpush1.msra.mxu0 %v1275
        %1433 = vmatprep.subr.mxu0 0.0
        %1434 = vmatpush1.msra.mxu0 %v1274
        %1435 = vmatprep.subr.mxu0 0.0
        %1436 = vmatpush1.msra.mxu0 %v1273
        %1437 = vmatprep.subr.mxu0 0.0
        %1438 = vmatpush2.msra.mxu0 0.0
        %1439 = vmatprep.subr.mxu0 0.0
        %1440 = vmatpush2.msra.mxu0 0.0
        %1441 = vmatprep.subr.mxu0 0.0
        %1442 = vmatpush2.msra.mxu0 0.0
        %1443 = vmatprep.subr.mxu0 0.0
        %1444 = vmatpush2.msra.mxu0 0.0
        %1445 = vmatprep.subr.mxu0 0.0
        %1446 = vmatpush2.msra.mxu0 0.0
        %1447 = vmatprep.subr.mxu0 0.0
        %1448 = vmatpush2.msra.mxu0 0.0
        %1449 = vmatprep.subr.mxu0 0.0
        %1450 = vmatpush2.msra.mxu0 0.0
        %1451 = vmatprep.subr.mxu0 0.0
        %1452 = vmatpush2.msra.mxu0 0.0
        %1453 = vmatprep.subr.mxu0 0.0
        %1454 = vmatpush2.msra.mxu0 0.0
        %1455 = vmatprep.subr.mxu0 0.0
        %1456 = vmatpush2.msra.mxu0 0.0
        %1457 = vmatprep.subr.mxu0 0.0
        %1458 = vmatpush2.msra.mxu0 0.0
        %1459 = vmatprep.subr.mxu0 0.0
        %1460 = vmatpush2.msra.mxu0 0.0
        %1461 = vmatprep.subr.mxu0 0.0
        %1462 = vmatpush2.msra.mxu0 0.0
        %1463 = vmatprep.subr.mxu0 0.0
        %1464 = vmatpush2.msra.mxu0 0.0
        %1465 = vmatprep.subr.mxu0 0.0
        %1466 = vmatpush2.msra.mxu0 0.0
        %1467 = vmatprep.subr.mxu0 0.0
        %1468 = vmatpush2.msra.mxu0 0.0
        %1469 = vmatprep.mubr.f32.mxu0 0.0
        %1470 = vmatmul.mubr.f32.gmra.mxu0 %v1403
        %v1471 = vpop.f32.mrf.mxu0
        %v1472 = vadd.f32 0.0, %v1471
        %v1473 = vpop.f32.mrf.mxu0
        %1474 = vdwg.mxu0
        %v1476 = vlaneseq
        %v1477 = vshrl.u32 %v1476, 7
        %v1478 = vsub.s32 0, %v1477
        %v1479 = vrot.slane %v1315, %v1478
        %v1481 = vadd.f32 %v1479, %v1472
        %v1482 = vrot.slane %v1394, 3
        %v1483 = vsel %vm1034, %v1482, 0
        %1485 = vmatprep.subr.mxu0 0.0
        %1486 = vmatpush1.msra.mxu0 0.0
        %1487 = vmatprep.subr.mxu0 0.0
        %1488 = vmatpush1.msra.mxu0 0.0
        %1489 = vmatprep.subr.mxu0 0.0
        %1490 = vmatpush1.msra.mxu0 %v1300
        %1491 = vmatprep.subr.mxu0 0.0
        %1492 = vmatpush1.msra.mxu0 %v1299
        %1493 = vmatprep.subr.mxu0 0.0
        %1494 = vmatpush1.msra.mxu0 %v1298
        %1495 = vmatprep.subr.mxu0 0.0
        %1496 = vmatpush1.msra.mxu0 %v1297
        %1497 = vmatprep.subr.mxu0 0.0
        %1498 = vmatpush1.msra.mxu0 %v1296
        %1499 = vmatprep.subr.mxu0 0.0
        %1500 = vmatpush1.msra.mxu0 %v1295
        %1501 = vmatprep.subr.mxu0 0.0
        %1502 = vmatpush1.msra.mxu0 %v1294
        %1503 = vmatprep.subr.mxu0 0.0
        %1504 = vmatpush1.msra.mxu0 %v1293
        %1505 = vmatprep.subr.mxu0 0.0
        %1506 = vmatpush1.msra.mxu0 %v1292
        %1507 = vmatprep.subr.mxu0 0.0
        %1508 = vmatpush1.msra.mxu0 %v1291
        %1509 = vmatprep.subr.mxu0 0.0
        %1510 = vmatpush1.msra.mxu0 %v1290
        %1511 = vmatprep.subr.mxu0 0.0
        %1512 = vmatpush1.msra.mxu0 %v1289
        %1513 = vmatprep.subr.mxu0 0.0
        %1514 = vmatpush1.msra.mxu0 %v1288
        %1515 = vmatprep.subr.mxu0 0.0
        %1516 = vmatpush1.msra.mxu0 %v1287
        %1517 = vmatprep.subr.mxu0 0.0
        %1518 = vmatpush2.msra.mxu0 0.0
        %1519 = vmatprep.subr.mxu0 0.0
        %1520 = vmatpush2.msra.mxu0 0.0
        %1521 = vmatprep.subr.mxu0 0.0
        %1522 = vmatpush2.msra.mxu0 0.0
        %1523 = vmatprep.subr.mxu0 0.0
        %1524 = vmatpush2.msra.mxu0 0.0
        %1525 = vmatprep.subr.mxu0 0.0
        %1526 = vmatpush2.msra.mxu0 0.0
        %1527 = vmatprep.subr.mxu0 0.0
        %1528 = vmatpush2.msra.mxu0 0.0
        %1529 = vmatprep.subr.mxu0 0.0
        %1530 = vmatpush2.msra.mxu0 0.0
        %1531 = vmatprep.subr.mxu0 0.0
        %1532 = vmatpush2.msra.mxu0 0.0
        %1533 = vmatprep.subr.mxu0 0.0
        %1534 = vmatpush2.msra.mxu0 0.0
        %1535 = vmatprep.subr.mxu0 0.0
        %1536 = vmatpush2.msra.mxu0 0.0
        %1537 = vmatprep.subr.mxu0 0.0
        %1538 = vmatpush2.msra.mxu0 0.0
        %1539 = vmatprep.subr.mxu0 0.0
        %1540 = vmatpush2.msra.mxu0 0.0
        %1541 = vmatprep.subr.mxu0 0.0
        %1542 = vmatpush2.msra.mxu0 0.0
        %1543 = vmatprep.subr.mxu0 0.0
        %1544 = vmatpush2.msra.mxu0 0.0
        %1545 = vmatprep.subr.mxu0 0.0
        %1546 = vmatpush2.msra.mxu0 0.0
        %1547 = vmatprep.subr.mxu0 0.0
        %1548 = vmatpush2.msra.mxu0 0.0
        %1549 = vmatprep.mubr.f32.mxu0 0.0
        %1550 = vmatmul.mubr.f32.gmra.mxu0 %v1483
        %v1551 = vpop.f32.mrf.mxu0
        %v1552 = vadd.f32 0.0, %v1551
        %v1553 = vpop.f32.mrf.mxu0
        %1554 = vdwg.mxu0
        %v1555 = vadd.f32 %v1481, %v1552
        %v1557 = vrot.slane %v1394, 6
        %v1558 = vrot.slane %v1399, 6
        %v1559 = vsel %vm699, %v1557, %v1558
        %v1560 = vsel %vm1034, %v1559, 0
        %1562 = vmatprep.subr.mxu0 0.0
        %1563 = vmatpush1.msra.mxu0 0.0
        %1564 = vmatprep.subr.mxu0 0.0
        %1565 = vmatpush1.msra.mxu0 0.0
        %1566 = vmatprep.subr.mxu0 0.0
        %1567 = vmatpush1.msra.mxu0 %v1314
        %1568 = vmatprep.subr.mxu0 0.0
        %1569 = vmatpush1.msra.mxu0 %v1313
        %1570 = vmatprep.subr.mxu0 0.0
        %1571 = vmatpush1.msra.mxu0 %v1312
        %1572 = vmatprep.subr.mxu0 0.0
        %1573 = vmatpush1.msra.mxu0 %v1311
        %1574 = vmatprep.subr.mxu0 0.0
        %1575 = vmatpush1.msra.mxu0 %v1310
        %1576 = vmatprep.subr.mxu0 0.0
        %1577 = vmatpush1.msra.mxu0 %v1309
        %1578 = vmatprep.subr.mxu0 0.0
        %1579 = vmatpush1.msra.mxu0 %v1308
        %1580 = vmatprep.subr.mxu0 0.0
        %1581 = vmatpush1.msra.mxu0 %v1307
        %1582 = vmatprep.subr.mxu0 0.0
        %1583 = vmatpush1.msra.mxu0 %v1306
        %1584 = vmatprep.subr.mxu0 0.0
        %1585 = vmatpush1.msra.mxu0 %v1305
        %1586 = vmatprep.subr.mxu0 0.0
        %1587 = vmatpush1.msra.mxu0 %v1304
        %1588 = vmatprep.subr.mxu0 0.0
        %1589 = vmatpush1.msra.mxu0 %v1303
        %1590 = vmatprep.subr.mxu0 0.0
        %1591 = vmatpush1.msra.mxu0 %v1302
        %1592 = vmatprep.subr.mxu0 0.0
        %1593 = vmatpush1.msra.mxu0 %v1301
        %1594 = vmatprep.subr.mxu0 0.0
        %1595 = vmatpush2.msra.mxu0 0.0
        %1596 = vmatprep.subr.mxu0 0.0
        %1597 = vmatpush2.msra.mxu0 0.0
        %1598 = vmatprep.subr.mxu0 0.0
        %1599 = vmatpush2.msra.mxu0 0.0
        %1600 = vmatprep.subr.mxu0 0.0
        %1601 = vmatpush2.msra.mxu0 0.0
        %1602 = vmatprep.subr.mxu0 0.0
        %1603 = vmatpush2.msra.mxu0 0.0
        %1604 = vmatprep.subr.mxu0 0.0
        %1605 = vmatpush2.msra.mxu0 0.0
        %1606 = vmatprep.subr.mxu0 0.0
        %1607 = vmatpush2.msra.mxu0 0.0
        %1608 = vmatprep.subr.mxu0 0.0
        %1609 = vmatpush2.msra.mxu0 0.0
        %1610 = vmatprep.subr.mxu0 0.0
        %1611 = vmatpush2.msra.mxu0 0.0
        %1612 = vmatprep.subr.mxu0 0.0
        %1613 = vmatpush2.msra.mxu0 0.0
        %1614 = vmatprep.subr.mxu0 0.0
        %1615 = vmatpush2.msra.mxu0 0.0
        %1616 = vmatprep.subr.mxu0 0.0
        %1617 = vmatpush2.msra.mxu0 0.0
        %1618 = vmatprep.subr.mxu0 0.0
        %1619 = vmatpush2.msra.mxu0 0.0
        %1620 = vmatprep.subr.mxu0 0.0
        %1621 = vmatpush2.msra.mxu0 0.0
        %1622 = vmatprep.subr.mxu0 0.0
        %1623 = vmatpush2.msra.mxu0 0.0
        %1624 = vmatprep.subr.mxu0 0.0
        %1625 = vmatpush2.msra.mxu0 0.0
        %1626 = vmatprep.mubr.f32.mxu0 0.0
        %1627 = vmatmul.mubr.f32.gmra.mxu0 %v1560
        %v1628 = vpop.f32.mrf.mxu0
        %v1629 = vadd.f32 0.0, %v1628
        %v1630 = vpop.f32.mrf.mxu0
        %1631 = vdwg.mxu0
        %v1632 = vadd.f32 %v1555, %v1629
        %v1633 = vmax.f32 %v1632, 0.0
        %v1634 = vld [vmem:[%s10] sm:$0xff]
        %v1635 = vld [vmem:[%s10 + $0x8] sm:$0xff]
        %v1636 = vld [vmem:[%s10 + $0x10] sm:$0xff]
        %v1637 = vld [vmem:[%s10 + $0x18] sm:$0xff]
        %v1638 = vld [vmem:[%s10 + $0x20] sm:$0xff]
        %v1639 = vld [vmem:[%s10 + $0x28] sm:$0xff]
        %v1640 = vld [vmem:[%s10 + $0x30] sm:$0xff]
        %v1641 = vld [vmem:[%s10 + $0x38] sm:$0xff]
        %v1642 = vld [vmem:[%s10 + $0x40] sm:$0xff]
        %v1643 = vld [vmem:[%s10 + $0x48] sm:$0xff]
        %v1644 = vld [vmem:[%s10 + $0x50] sm:$0xff]
        %v1645 = vld [vmem:[%s10 + $0x58] sm:$0xff]
        %v1646 = vld [vmem:[%s10 + $0x60] sm:$0xff]
        %v1647 = vld [vmem:[%s10 + $0x68] sm:$0xff]
        %v1648 = vld [vmem:[%s10 + $0x70] sm:$0xff]
        %v1649 = vld [vmem:[%s10 + $0x78] sm:$0xff]
        %v1650 = vld [vmem:[%s10 + $0x80] sm:$0xff]
        %v1651 = vld [vmem:[%s10 + $0x88] sm:$0xff]
        %v1652 = vld [vmem:[%s10 + $0x90] sm:$0xff]
        %v1653 = vld [vmem:[%s10 + $0x98] sm:$0xff]
        %v1654 = vld [vmem:[%s10 + $0xa0] sm:$0xff]
        %v1655 = vld [vmem:[%s10 + $0xa8] sm:$0xff]
        %v1656 = vld [vmem:[%s10 + $0xb0] sm:$0xff]
        %v1657 = vld [vmem:[%s10 + $0xb8] sm:$0xff]
        %v1658 = vld [vmem:[%s10 + $0xc0] sm:$0xff]
        %v1659 = vld [vmem:[%s10 + $0xc8] sm:$0xff]
        %v1660 = vld [vmem:[%s10 + $0xd0] sm:$0xff]
        %v1661 = vld [vmem:[%s10 + $0xd8] sm:$0xff]
        %v1662 = vld [vmem:[%s10 + $0xe0] sm:$0xff]
        %v1663 = vld [vmem:[%s10 + $0xe8] sm:$0xff]
        %v1664 = vld [vmem:[%s10 + $0xf0] sm:$0xff]
        %v1665 = vld [vmem:[%s10 + $0xf8] sm:$0xff]
        %v1666 = vld [vmem:[%s10 + $0x100] sm:$0xff]
        %v1667 = vld [vmem:[%s10 + $0x108] sm:$0xff]
        %v1668 = vld [vmem:[%s10 + $0x110] sm:$0xff]
        %v1669 = vld [vmem:[%s10 + $0x118] sm:$0xff]
        %v1670 = vld [vmem:[%s11] sm:$0x1]
        %vm1671 = vcmask 785408
        %v1673 = vsel %vm1671, %v1633, 0
        %1675 = vmatprep.subr.mxu0 0.0
        %1676 = vmatpush1.msra.mxu0 0.0
        %1677 = vmatprep.subr.mxu0 0.0
        %1678 = vmatpush1.msra.mxu0 0.0
        %1679 = vmatprep.subr.mxu0 0.0
        %1680 = vmatpush1.msra.mxu0 0.0
        %1681 = vmatprep.subr.mxu0 0.0
        %1682 = vmatpush1.msra.mxu0 0.0
        %1683 = vmatprep.subr.mxu0 0.0
        %1684 = vmatpush1.msra.mxu0 %v1645
        %1685 = vmatprep.subr.mxu0 0.0
        %1686 = vmatpush1.msra.mxu0 %v1644
        %1687 = vmatprep.subr.mxu0 0.0
        %1688 = vmatpush1.msra.mxu0 %v1643
        %1689 = vmatprep.subr.mxu0 0.0
        %1690 = vmatpush1.msra.mxu0 %v1642
        %1691 = vmatprep.subr.mxu0 0.0
        %1692 = vmatpush1.msra.mxu0 %v1641
        %1693 = vmatprep.subr.mxu0 0.0
        %1694 = vmatpush1.msra.mxu0 %v1640
        %1695 = vmatprep.subr.mxu0 0.0
        %1696 = vmatpush1.msra.mxu0 %v1639
        %1697 = vmatprep.subr.mxu0 0.0
        %1698 = vmatpush1.msra.mxu0 %v1638
        %1699 = vmatprep.subr.mxu0 0.0
        %1700 = vmatpush1.msra.mxu0 %v1637
        %1701 = vmatprep.subr.mxu0 0.0
        %1702 = vmatpush1.msra.mxu0 %v1636
        %1703 = vmatprep.subr.mxu0 0.0
        %1704 = vmatpush1.msra.mxu0 %v1635
        %1705 = vmatprep.subr.mxu0 0.0
        %1706 = vmatpush1.msra.mxu0 %v1634
        %1707 = vmatprep.subr.mxu0 0.0
        %1708 = vmatpush2.msra.mxu0 0.0
        %1709 = vmatprep.subr.mxu0 0.0
        %1710 = vmatpush2.msra.mxu0 0.0
        %1711 = vmatprep.subr.mxu0 0.0
        %1712 = vmatpush2.msra.mxu0 0.0
        %1713 = vmatprep.subr.mxu0 0.0
        %1714 = vmatpush2.msra.mxu0 0.0
        %1715 = vmatprep.subr.mxu0 0.0
        %1716 = vmatpush2.msra.mxu0 0.0
        %1717 = vmatprep.subr.mxu0 0.0
        %1718 = vmatpush2.msra.mxu0 0.0
        %1719 = vmatprep.subr.mxu0 0.0
        %1720 = vmatpush2.msra.mxu0 0.0
        %1721 = vmatprep.subr.mxu0 0.0
        %1722 = vmatpush2.msra.mxu0 0.0
        %1723 = vmatprep.subr.mxu0 0.0
        %1724 = vmatpush2.msra.mxu0 0.0
        %1725 = vmatprep.subr.mxu0 0.0
        %1726 = vmatpush2.msra.mxu0 0.0
        %1727 = vmatprep.subr.mxu0 0.0
        %1728 = vmatpush2.msra.mxu0 0.0
        %1729 = vmatprep.subr.mxu0 0.0
        %1730 = vmatpush2.msra.mxu0 0.0
        %1731 = vmatprep.subr.mxu0 0.0
        %1732 = vmatpush2.msra.mxu0 0.0
        %1733 = vmatprep.subr.mxu0 0.0
        %1734 = vmatpush2.msra.mxu0 0.0
        %1735 = vmatprep.subr.mxu0 0.0
        %1736 = vmatpush2.msra.mxu0 0.0
        %1737 = vmatprep.subr.mxu0 0.0
        %1738 = vmatpush2.msra.mxu0 0.0
        %1739 = vmatprep.mubr.f32.mxu0 0.0
        %1740 = vmatmul.mubr.f32.gmra.mxu0 %v1673
        %v1741 = vpop.f32.mrf.mxu0
        %v1742 = vadd.f32 0.0, %v1741
        %v1743 = vpop.f32.mrf.mxu0
        %1744 = vdwg.mxu0
        %v1745 = vadd.f32 %v1670, %v1742
        %v1746 = vrot.slane %v1633, 1
        %v1747 = vsel %vm1671, %v1746, 0
        %1749 = vmatprep.subr.mxu0 0.0
        %1750 = vmatpush1.msra.mxu0 0.0
        %1751 = vmatprep.subr.mxu0 0.0
        %1752 = vmatpush1.msra.mxu0 0.0
        %1753 = vmatprep.subr.mxu0 0.0
        %1754 = vmatpush1.msra.mxu0 0.0
        %1755 = vmatprep.subr.mxu0 0.0
        %1756 = vmatpush1.msra.mxu0 0.0
        %1757 = vmatprep.subr.mxu0 0.0
        %1758 = vmatpush1.msra.mxu0 %v1657
        %1759 = vmatprep.subr.mxu0 0.0
        %1760 = vmatpush1.msra.mxu0 %v1656
        %1761 = vmatprep.subr.mxu0 0.0
        %1762 = vmatpush1.msra.mxu0 %v1655
        %1763 = vmatprep.subr.mxu0 0.0
        %1764 = vmatpush1.msra.mxu0 %v1654
        %1765 = vmatprep.subr.mxu0 0.0
        %1766 = vmatpush1.msra.mxu0 %v1653
        %1767 = vmatprep.subr.mxu0 0.0
        %1768 = vmatpush1.msra.mxu0 %v1652
        %1769 = vmatprep.subr.mxu0 0.0
        %1770 = vmatpush1.msra.mxu0 %v1651
        %1771 = vmatprep.subr.mxu0 0.0
        %1772 = vmatpush1.msra.mxu0 %v1650
        %1773 = vmatprep.subr.mxu0 0.0
        %1774 = vmatpush1.msra.mxu0 %v1649
        %1775 = vmatprep.subr.mxu0 0.0
        %1776 = vmatpush1.msra.mxu0 %v1648
        %1777 = vmatprep.subr.mxu0 0.0
        %1778 = vmatpush1.msra.mxu0 %v1647
        %1779 = vmatprep.subr.mxu0 0.0
        %1780 = vmatpush1.msra.mxu0 %v1646
        %1781 = vmatprep.subr.mxu0 0.0
        %1782 = vmatpush2.msra.mxu0 0.0
        %1783 = vmatprep.subr.mxu0 0.0
        %1784 = vmatpush2.msra.mxu0 0.0
        %1785 = vmatprep.subr.mxu0 0.0
        %1786 = vmatpush2.msra.mxu0 0.0
        %1787 = vmatprep.subr.mxu0 0.0
        %1788 = vmatpush2.msra.mxu0 0.0
        %1789 = vmatprep.subr.mxu0 0.0
        %1790 = vmatpush2.msra.mxu0 0.0
        %1791 = vmatprep.subr.mxu0 0.0
        %1792 = vmatpush2.msra.mxu0 0.0
        %1793 = vmatprep.subr.mxu0 0.0
        %1794 = vmatpush2.msra.mxu0 0.0
        %1795 = vmatprep.subr.mxu0 0.0
        %1796 = vmatpush2.msra.mxu0 0.0
        %1797 = vmatprep.subr.mxu0 0.0
        %1798 = vmatpush2.msra.mxu0 0.0
        %1799 = vmatprep.subr.mxu0 0.0
        %1800 = vmatpush2.msra.mxu0 0.0
        %1801 = vmatprep.subr.mxu0 0.0
        %1802 = vmatpush2.msra.mxu0 0.0
        %1803 = vmatprep.subr.mxu0 0.0
        %1804 = vmatpush2.msra.mxu0 0.0
        %1805 = vmatprep.subr.mxu0 0.0
        %1806 = vmatpush2.msra.mxu0 0.0
        %1807 = vmatprep.subr.mxu0 0.0
        %1808 = vmatpush2.msra.mxu0 0.0
        %1809 = vmatprep.subr.mxu0 0.0
        %1810 = vmatpush2.msra.mxu0 0.0
        %1811 = vmatprep.subr.mxu0 0.0
        %1812 = vmatpush2.msra.mxu0 0.0
        %1813 = vmatprep.mubr.f32.mxu0 0.0
        %1814 = vmatmul.mubr.f32.gmra.mxu0 %v1747
        %v1815 = vpop.f32.mrf.mxu0
        %v1816 = vadd.f32 0.0, %v1815
        %v1817 = vpop.f32.mrf.mxu0
        %1818 = vdwg.mxu0
        %v1819 = vadd.f32 %v1745, %v1816
        %v1820 = vrot.slane %v1633, 2
        %v1821 = vsel %vm1671, %v1820, 0
        %1823 = vmatprep.subr.mxu0 0.0
        %1824 = vmatpush1.msra.mxu0 0.0
        %1825 = vmatprep.subr.mxu0 0.0
        %1826 = vmatpush1.msra.mxu0 0.0
        %1827 = vmatprep.subr.mxu0 0.0
        %1828 = vmatpush1.msra.mxu0 0.0
        %1829 = vmatprep.subr.mxu0 0.0
        %1830 = vmatpush1.msra.mxu0 0.0
        %1831 = vmatprep.subr.mxu0 0.0
        %1832 = vmatpush1.msra.mxu0 %v1669
        %1833 = vmatprep.subr.mxu0 0.0
        %1834 = vmatpush1.msra.mxu0 %v1668
        %1835 = vmatprep.subr.mxu0 0.0
        %1836 = vmatpush1.msra.mxu0 %v1667
        %1837 = vmatprep.subr.mxu0 0.0
        %1838 = vmatpush1.msra.mxu0 %v1666
        %1839 = vmatprep.subr.mxu0 0.0
        %1840 = vmatpush1.msra.mxu0 %v1665
        %1841 = vmatprep.subr.mxu0 0.0
        %1842 = vmatpush1.msra.mxu0 %v1664
        %1843 = vmatprep.subr.mxu0 0.0
        %1844 = vmatpush1.msra.mxu0 %v1663
        %1845 = vmatprep.subr.mxu0 0.0
        %1846 = vmatpush1.msra.mxu0 %v1662
        %1847 = vmatprep.subr.mxu0 0.0
        %1848 = vmatpush1.msra.mxu0 %v1661
        %1849 = vmatprep.subr.mxu0 0.0
        %1850 = vmatpush1.msra.mxu0 %v1660
        %1851 = vmatprep.subr.mxu0 0.0
        %1852 = vmatpush1.msra.mxu0 %v1659
        %1853 = vmatprep.subr.mxu0 0.0
        %1854 = vmatpush1.msra.mxu0 %v1658
        %1855 = vmatprep.subr.mxu0 0.0
        %1856 = vmatpush2.msra.mxu0 0.0
        %1857 = vmatprep.subr.mxu0 0.0
        %1858 = vmatpush2.msra.mxu0 0.0
        %1859 = vmatprep.subr.mxu0 0.0
        %1860 = vmatpush2.msra.mxu0 0.0
        %1861 = vmatprep.subr.mxu0 0.0
        %1862 = vmatpush2.msra.mxu0 0.0
        %1863 = vmatprep.subr.mxu0 0.0
        %1864 = vmatpush2.msra.mxu0 0.0
        %1865 = vmatprep.subr.mxu0 0.0
        %1866 = vmatpush2.msra.mxu0 0.0
        %1867 = vmatprep.subr.mxu0 0.0
        %1868 = vmatpush2.msra.mxu0 0.0
        %1869 = vmatprep.subr.mxu0 0.0
        %1870 = vmatpush2.msra.mxu0 0.0
        %1871 = vmatprep.subr.mxu0 0.0
        %1872 = vmatpush2.msra.mxu0 0.0
        %1873 = vmatprep.subr.mxu0 0.0
        %1874 = vmatpush2.msra.mxu0 0.0
        %1875 = vmatprep.subr.mxu0 0.0
        %1876 = vmatpush2.msra.mxu0 0.0
        %1877 = vmatprep.subr.mxu0 0.0
        %1878 = vmatpush2.msra.mxu0 0.0
        %1879 = vmatprep.subr.mxu0 0.0
        %1880 = vmatpush2.msra.mxu0 0.0
        %1881 = vmatprep.subr.mxu0 0.0
        %1882 = vmatpush2.msra.mxu0 0.0
        %1883 = vmatprep.subr.mxu0 0.0
        %1884 = vmatpush2.msra.mxu0 0.0
        %1885 = vmatprep.subr.mxu0 0.0
        %1886 = vmatpush2.msra.mxu0 0.0
        %1887 = vmatprep.mubr.f32.mxu0 0.0
        %1888 = vmatmul.mubr.f32.gmra.mxu0 %v1821
        %v1889 = vpop.f32.mrf.mxu0
        %v1890 = vadd.f32 0.0, %v1889
        %v1891 = vpop.f32.mrf.mxu0
        %1892 = vdwg.mxu0
        %v1893 = vadd.f32 %v1819, %v1890
        %v1894 = vmax.f32 %v1893, 0.0
        %v1895 = vld [vmem:[%s12] sm:$0xff]
        %v1896 = vld [vmem:[%s12 + $0x8] sm:$0xff]
        %v1897 = vld [vmem:[%s12 + $0x10] sm:$0xff]
        %v1898 = vld [vmem:[%s12 + $0x18] sm:$0xff]
        %v1899 = vld [vmem:[%s12 + $0x20] sm:$0xff]
        %v1900 = vld [vmem:[%s12 + $0x28] sm:$0xff]
        %v1901 = vld [vmem:[%s12 + $0x30] sm:$0xff]
        %v1902 = vld [vmem:[%s12 + $0x38] sm:$0xff]
        %v1903 = vld [vmem:[%s12 + $0x40] sm:$0xff]
        %v1904 = vld [vmem:[%s12 + $0x48] sm:$0xff]
        %v1905 = vld [vmem:[%s12 + $0x50] sm:$0xff]
        %v1906 = vld [vmem:[%s12 + $0x58] sm:$0xff]
        %v1907 = vld [vmem:[%s12 + $0x60] sm:$0xff]
        %v1908 = vld [vmem:[%s12 + $0x68] sm:$0xff]
        %v1909 = vld [vmem:[%s12 + $0x70] sm:$0xff]
        %v1910 = vld [vmem:[%s12 + $0x78] sm:$0xff]
        %v1911 = vld [vmem:[%s13] sm:$0x1]
        %1912 = vmatprep.subr.mxu0 0.0
        %1913 = vmatpush1.msra.mxu0 %v1910
        %1914 = vmatprep.subr.mxu0 0.0
        %1915 = vmatpush1.msra.mxu0 %v1909
        %1916 = vmatprep.subr.mxu0 0.0
        %1917 = vmatpush1.msra.mxu0 %v1908
        %1918 = vmatprep.subr.mxu0 0.0
        %1919 = vmatpush1.msra.mxu0 %v1907
        %1920 = vmatprep.subr.mxu0 0.0
        %1921 = vmatpush1.msra.mxu0 %v1906
        %1922 = vmatprep.subr.mxu0 0.0
        %1923 = vmatpush1.msra.mxu0 %v1905
        %1924 = vmatprep.subr.mxu0 0.0
        %1925 = vmatpush1.msra.mxu0 %v1904
        %1926 = vmatprep.subr.mxu0 0.0
        %1927 = vmatpush1.msra.mxu0 %v1903
        %1928 = vmatprep.subr.mxu0 0.0
        %1929 = vmatpush1.msra.mxu0 %v1902
        %1930 = vmatprep.subr.mxu0 0.0
        %1931 = vmatpush1.msra.mxu0 %v1901
        %1932 = vmatprep.subr.mxu0 0.0
        %1933 = vmatpush1.msra.mxu0 %v1900
        %1934 = vmatprep.subr.mxu0 0.0
        %1935 = vmatpush1.msra.mxu0 %v1899
        %1936 = vmatprep.subr.mxu0 0.0
        %1937 = vmatpush1.msra.mxu0 %v1898
        %1938 = vmatprep.subr.mxu0 0.0
        %1939 = vmatpush1.msra.mxu0 %v1897
        %1940 = vmatprep.subr.mxu0 0.0
        %1941 = vmatpush1.msra.mxu0 %v1896
        %1942 = vmatprep.subr.mxu0 0.0
        %1943 = vmatpush1.msra.mxu0 %v1895
        %1944 = vmatprep.subr.mxu0 0.0
        %1945 = vmatpush2.msra.mxu0 0.0
        %1946 = vmatprep.subr.mxu0 0.0
        %1947 = vmatpush2.msra.mxu0 0.0
        %1948 = vmatprep.subr.mxu0 0.0
        %1949 = vmatpush2.msra.mxu0 0.0
        %1950 = vmatprep.subr.mxu0 0.0
        %1951 = vmatpush2.msra.mxu0 0.0
        %1952 = vmatprep.subr.mxu0 0.0
        %1953 = vmatpush2.msra.mxu0 0.0
        %1954 = vmatprep.subr.mxu0 0.0
        %1955 = vmatpush2.msra.mxu0 0.0
        %1956 = vmatprep.subr.mxu0 0.0
        %1957 = vmatpush2.msra.mxu0 0.0
        %1958 = vmatprep.subr.mxu0 0.0
        %1959 = vmatpush2.msra.mxu0 0.0
        %1960 = vmatprep.subr.mxu0 0.0
        %1961 = vmatpush2.msra.mxu0 0.0
        %1962 = vmatprep.subr.mxu0 0.0
        %1963 = vmatpush2.msra.mxu0 0.0
        %1964 = vmatprep.subr.mxu0 0.0
        %1965 = vmatpush2.msra.mxu0 0.0
        %1966 = vmatprep.subr.mxu0 0.0
        %1967 = vmatpush2.msra.mxu0 0.0
        %1968 = vmatprep.subr.mxu0 0.0
        %1969 = vmatpush2.msra.mxu0 0.0
        %1970 = vmatprep.subr.mxu0 0.0
        %1971 = vmatpush2.msra.mxu0 0.0
        %1972 = vmatprep.subr.mxu0 0.0
        %1973 = vmatpush2.msra.mxu0 0.0
        %1974 = vmatprep.subr.mxu0 0.0
        %1975 = vmatpush2.msra.mxu0 0.0
        %1976 = vmatprep.mubr.f32.mxu0 0.0
        %1977 = vmatmul.mubr.f32.gmra.mxu0 %v1894
        %v1978 = vpop.f32.mrf.mxu0
        %v1979 = vadd.f32 %v1911, %v1978
        %v1980 = vpop.f32.mrf.mxu0
        %1981 = vdwg.mxu0
        %vm1982 = vcmask 24576
        %1983 = vst.msk [vmem:[%s459] sm:$0x1] %vm1982, %v1979
        %s1984 = sand.u32 %s335, 1
        %s1985 = scalar_lea.sflag [#allocation3], %s1984
        %s1986 = sand.u32 %s335, 1
        %s1987 = scalar_lea.vmem [#allocation2], %s1986
        // Predicated region
        $region77: #{encoder_forward.1} parent=75 // pred_check
          %p1988 = pneg %p345
        $region78: #{encoder_forward.1} parent=75 // pred_check_branch
          %1990 = sbr.rel (%p1988) target = $region80
        $region79: #{encoder_forward.1} parent=75 // pred_region
          %s1992 = ssub.s32 16, 16
          %1993 = vsyncadd %s1985, %s1992
          %s1994 = smul.addr %s28, 16
          %s1995 = scalar_lea.hbm %s14, %s1994
          %s1997 = sshll.u32 %s1987, 4
          %s1998 = int_to_ptr.vmem [resolvable:$true] %s1997
          %2000 = dma.vmem_to_hbm [thread:$0]  %s1998, 16, %s1995, %s1985
        $region80: #{encoder_forward.1} parent=75 // pred_fallthru
          _
      $region76: #{encoder_forward.1} parent=5 // pred_fallthru
        _
      %p2001 = scmp.le.s32.totalorder 2, %s23
      // Predicated region
      $region81: #{encoder_forward.1} parent=5 // pred_check
        %p2002 = pneg %p2001
      $region82: #{encoder_forward.1} parent=5 // pred_check_branch
        %2004 = sbr.rel (%p2002) target = $region84
      $region83: #{encoder_forward.1} parent=5 // pred_region
        %s2005 = ssub.s32 %s23, 2
        // Predicated region
        $region85: #{encoder_forward.1} parent=83 // pred_check
          %p2006 = pneg %p351
        $region86: #{encoder_forward.1} parent=83 // pred_check_branch
          %2008 = sbr.rel (%p2006) target = $region88
        $region87: #{encoder_forward.1} parent=83 // pred_region
          %s2009 = sand.u32 %s336, 1
          %s2010 = scalar_lea.sflag [#allocation3], %s2009
          %s2011 = sand.u32 %s336, 1
          %s2012 = scalar_lea.vmem [#allocation2], %s2011
          %2013 = dma.done %s2010, 16
        $region88: #{encoder_forward.1} parent=83 // pred_fallthru
          _
      $region84: #{encoder_forward.1} parent=5 // pred_fallthru
        _
    $region6: #{encoder_forward.1} parent=1 // loop_footer
      %s27 = sadd.s32 1, %s23
    $region7: #{encoder_forward.1} parent=1 // loop_footer_branch
      %22 = sbr.rel target = $region3
    $region8: #{encoder_forward.1} parent=1 // loop_exit
      _
    %2014 = vsyncpa [#allocation3], 1
    %s2015 = scalar_lea.sflag [#allocation3], 1
    %2016 = vsyncpa %s2015, 1

</llo_original>
